<compile_context>
chip_gen: v6e
topology: v6e:2x2x1
jax: 0.10.0
libtpu: 0.0.40
codegen_flags: <defaults>
</compile_context>

<pallas_src>
import functools

import jax
import jax.numpy as jnp
from jax.experimental import pallas as pl
from jax.experimental.pallas import tpu as pltpu

H1 = 60    # fc1 / fc3-out hidden width
Z = 30     # latent width
LANE = 128


def _round_up(x, m):
    return ((x + m - 1) // m) * m


def vae_kernel(x_ref, eps_ref,
               w1_ref, b1_ref,
               w_enc_ref, b_enc_ref,     # fused fc21|fc22: (H1, 2Z), (1, 2Z)
               w3_ref, b3_ref,
               w4_ref, b4_ref,
               out_ref):                 # (tb, out_w) bf16 slab: recon | mu | logvar | 0-pad
    num_cols = x_ref.shape[1]
    tb = out_ref.shape[0]
    pad = out_ref.shape[1] - (num_cols + 2 * Z)

    # ---- encode ----
    h1 = jnp.dot(x_ref[...], w1_ref[...],
                 preferred_element_type=jnp.float32) + b1_ref[...]
    h1 = jnp.maximum(h1, 0.0)                                        # F.relu

    mulv = jnp.dot(h1.astype(jnp.bfloat16), w_enc_ref[...],
                   preferred_element_type=jnp.float32) + b_enc_ref[...]
    mu = mulv[:, :Z]
    logvar = mulv[:, Z:]

    # ---- reparameterize: z = mu + eps * exp(0.5 * logvar) ----
    std = jnp.exp(0.5 * logvar)
    z = mu + eps_ref[...] * std                                      # eps bf16 -> f32 promote

    # ---- decode ----
    h3 = jnp.dot(z.astype(jnp.bfloat16), w3_ref[...],
                 preferred_element_type=jnp.float32) + b3_ref[...]
    h3 = jnp.maximum(h3, 0.0)                                        # F.relu
    logits = jnp.dot(h3.astype(jnp.bfloat16), w4_ref[...],
                     preferred_element_type=jnp.float32) + b4_ref[...]
    recon = 0.5 * (jnp.tanh(0.5 * logits) + 1.0)                     # sigmoid via EUP tanh

    # ---- single lane-dense (tb, 128k) store: recon | mu | logvar | zero-pad ----
    parts = [recon, mulv]
    if pad:
        parts.append(jnp.zeros((tb, pad), jnp.float32))
    out_ref[...] = jnp.concatenate(parts, axis=1).astype(out_ref.dtype)


def pack_params(params):
    """One-time parameter packing (hoisted out of the per-call path):
    bf16 MXU operand weights + fused fc21|fc22 weight/bias."""
    return {
        "w1": params["w1"].astype(jnp.bfloat16),
        "b1": params["b1"],
        "w_enc": jnp.concatenate([params["w21"], params["w22"]],
                                 axis=1).astype(jnp.bfloat16),
        "b_enc": jnp.concatenate([params["b21"], params["b22"]], axis=1),
        "w3": params["w3"].astype(jnp.bfloat16),
        "b3": params["b3"],
        "w4": params["w4"].astype(jnp.bfloat16),
        "b4": params["b4"],
    }


@functools.partial(jax.jit, static_argnames=("tb",))
def vae_forward(x, eps, packed, *, tb=None):
    """x: (B, num_cols) f32, eps: (B, Z) f32 -> (recon, mu, logvar) f32."""
    B, num_cols = x.shape

    # Batch tile: one big step for small/medium batches (amortize the ~0.35us/step
    # overhead); 1024-row tiles (>= 2 parallel steps -> both v7x TCs) for large B.
    if tb is None:
        b16 = _round_up(B, 16)
        tb = b16 if b16 <= 1024 else 1024

    nb = pl.cdiv(B, tb)
    Bp = nb * tb
    if Bp != B:
        x = jnp.pad(x, ((0, Bp - B), (0, 0)))
        eps = jnp.pad(eps, ((0, Bp - B), (0, 0)))

    x_bf = x.astype(jnp.bfloat16)
    eps_bf = eps.astype(jnp.bfloat16)

    out_w = _round_up(num_cols + 2 * Z, LANE)   # lane-dense fused output width

    args = (x_bf, eps_bf,
            packed["w1"], packed["b1"],
            packed["w_enc"], packed["b_enc"],
            packed["w3"], packed["b3"],
            packed["w4"], packed["b4"])

    batch_spec = lambda d: pl.BlockSpec((tb, d), lambda i: (i, 0))
    resident = lambda a: pl.BlockSpec(a.shape, lambda i: (0, 0))   # weights stay in VMEM

    in_specs = [batch_spec(num_cols), batch_spec(Z)] + [resident(a) for a in args[2:]]
    out_specs = batch_spec(out_w)
    out_shape = jax.ShapeDtypeStruct((Bp, out_w), jnp.bfloat16)

    flops = 2 * Bp * (num_cols * H1 + H1 * 2 * Z + Z * H1 + H1 * num_cols)
    transcendentals = Bp * (Z + num_cols)                    # exp for std, tanh for sigmoid
    bytes_accessed = (x_bf.size * 2 + eps_bf.size * 2
                      + sum(a.size * a.dtype.itemsize for a in args[2:])
                      + Bp * out_w * 2)

    slab = pl.pallas_call(
        vae_kernel,
        out_shape=out_shape,
        grid=(nb,),
        in_specs=in_specs,
        out_specs=out_specs,
        compiler_params=pltpu.CompilerParams(
            dimension_semantics=("parallel",)),
        cost_estimate=pl.CostEstimate(flops=flops,
                                      transcendentals=transcendentals,
                                      bytes_accessed=bytes_accessed),
    )(*args)

    slab = slab[:B].astype(jnp.float32)
    recon = slab[:, :num_cols]
    mu = slab[:, num_cols:num_cols + Z]
    logvar = slab[:, num_cols + Z:num_cols + 2 * Z]
    return recon, mu, logvar


def init_params(key, num_cols):
    """Deterministic init matching torch.nn.Linear shapes (stored transposed: (in, out))."""
    def linear(key, fan_in, fan_out):
        kw, kb = jax.random.split(key)
        bound = 1.0 / jnp.sqrt(jnp.float32(fan_in))
        w = jax.random.uniform(kw, (fan_in, fan_out), jnp.float32, -bound, bound)
        b = jax.random.uniform(kb, (1, fan_out), jnp.float32, -bound, bound)
        return w, b

    k1, k21, k22, k3, k4 = jax.random.split(key, 5)
    p = {}
    p["w1"], p["b1"] = linear(k1, num_cols, H1)    # fc1:  num_cols -> 60
    p["w21"], p["b21"] = linear(k21, H1, Z)        # fc21: 60 -> 30
    p["w22"], p["b22"] = linear(k22, H1, Z)        # fc22: 60 -> 30
    p["w3"], p["b3"] = linear(k3, Z, H1)           # fc3:  30 -> 60
    p["w4"], p["b4"] = linear(k4, H1, num_cols)    # fc4:  60 -> num_cols
    return p


def reference_forward(x, eps, p):
    """Pure-JAX reference matching the kernel's bf16-operand / f32-accumulate convention."""
    def mm(a, b):
        return jnp.dot(a.astype(jnp.bfloat16), b.astype(jnp.bfloat16),
                       preferred_element_type=jnp.float32)
    h1 = jnp.maximum(mm(x, p["w1"]) + p["b1"], 0.0)
    mu = mm(h1, p["w21"]) + p["b21"]
    logvar = mm(h1, p["w22"]) + p["b22"]
    std = jnp.exp(0.5 * logvar)
    z = mu + eps.astype(jnp.bfloat16) * std        # kernel consumes eps as bf16
    h3 = jnp.maximum(mm(z, p["w3"]) + p["b3"], 0.0)
    recon = jax.nn.sigmoid(mm(h3, p["w4"]) + p["b4"])
    return recon, mu, logvar


if __name__ == "__main__":
    key = jax.random.PRNGKey(0)
    k_params, k_x, k_eps = jax.random.split(key, 3)

    num_cols = 24
    batch = 256        # single grid step (tb = 256)

    params = init_params(k_params, num_cols)
    packed = pack_params(params)

    # forward() does x.view(-1, num_cols); provide already-flat (B, num_cols) input.
    x = jax.random.normal(k_x, (batch, num_cols), jnp.float32)
    # TODO(synk): reparameterize() draws eps = torch.randn_like(std) internally; eps is
    # generated here and passed in so the kernel stays deterministic and testable.
    eps = jax.random.normal(k_eps, (batch, Z), jnp.float32)

    recon, mu, logvar = vae_forward(x, eps, packed)
    jax.block_until_ready((recon, mu, logvar))

    recon_ref, mu_ref, logvar_ref = reference_forward(x, eps, params)
    assert recon.shape == (batch, num_cols)
    assert mu.shape == (batch, Z) and logvar.shape == (batch, Z)
    assert jnp.allclose(recon, recon_ref, atol=2e-2, rtol=2e-2), \
        float(jnp.max(jnp.abs(recon - recon_ref)))
    assert jnp.allclose(mu, mu_ref, atol=2e-2, rtol=2e-2), \
        float(jnp.max(jnp.abs(mu - mu_ref)))
    assert jnp.allclose(logvar, logvar_ref, atol=2e-2, rtol=2e-2), \
        float(jnp.max(jnp.abs(logvar - logvar_ref)))

    print("KERNEL_OK")
</pallas_src>

<mosaic_0001>
module attributes {stable_mosaic.version = 11 : i64} {
  func.func @vae_kernel(%arg0: i32, %arg1: memref<256x24xbf16, #tpu.memory_space<vmem>>, %arg2: memref<256x30xbf16, #tpu.memory_space<vmem>>, %arg3: memref<24x60xbf16, #tpu.memory_space<vmem>>, %arg4: memref<1x60xf32, #tpu.memory_space<vmem>>, %arg5: memref<60x60xbf16, #tpu.memory_space<vmem>>, %arg6: memref<1x60xf32, #tpu.memory_space<vmem>>, %arg7: memref<30x60xbf16, #tpu.memory_space<vmem>>, %arg8: memref<1x60xf32, #tpu.memory_space<vmem>>, %arg9: memref<60x24xbf16, #tpu.memory_space<vmem>>, %arg10: memref<1x24xf32, #tpu.memory_space<vmem>>, %arg11: memref<256x128xbf16, #tpu.memory_space<vmem>>) attributes {dimension_semantics = [#tpu.dimension_semantics<parallel>], iteration_bounds = array<i64: 1>, scalar_prefetch = 0 : i64, scratch_operands = 0 : i64, tpu.core_type = #tpu.core_type<tc>, window_params = [{transform_indices = @transform_0, window_bounds = array<i64: 256, 24>}, {transform_indices = @transform_1, window_bounds = array<i64: 256, 30>}, {pipeline_mode = #tpu.pipeline_mode<synchronous>, transform_indices = @transform_2, window_bounds = array<i64: 24, 60>}, {pipeline_mode = #tpu.pipeline_mode<synchronous>, transform_indices = @transform_3, window_bounds = array<i64: 1, 60>}, {pipeline_mode = #tpu.pipeline_mode<synchronous>, transform_indices = @transform_4, window_bounds = array<i64: 60, 60>}, {pipeline_mode = #tpu.pipeline_mode<synchronous>, transform_indices = @transform_5, window_bounds = array<i64: 1, 60>}, {pipeline_mode = #tpu.pipeline_mode<synchronous>, transform_indices = @transform_6, window_bounds = array<i64: 30, 60>}, {pipeline_mode = #tpu.pipeline_mode<synchronous>, transform_indices = @transform_7, window_bounds = array<i64: 1, 60>}, {pipeline_mode = #tpu.pipeline_mode<synchronous>, transform_indices = @transform_8, window_bounds = array<i64: 60, 24>}, {pipeline_mode = #tpu.pipeline_mode<synchronous>, transform_indices = @transform_9, window_bounds = array<i64: 1, 24>}, {transform_indices = @transform_10, window_bounds = array<i64: 256, 128>}]} {
    %c0 = arith.constant 0 : index
    %c0_0 = arith.constant 0 : index
    %0 = vector.load %arg1[%c0, %c0_0] : memref<256x24xbf16, #tpu.memory_space<vmem>>, vector<256x24xbf16>
    %c0_1 = arith.constant 0 : index
    %c0_2 = arith.constant 0 : index
    %1 = vector.load %arg3[%c0_1, %c0_2] : memref<24x60xbf16, #tpu.memory_space<vmem>>, vector<24x60xbf16>
    %cst = arith.constant dense<0.000000e+00> : vector<256x60xf32>
    %2 = tpu.matmul %0, %1, %cst {dimension_numbers = #tpu.dot_dimension_numbers<[1], [0], [0], [1], [0, 0, 1, 1], [], []>} : vector<256x24xbf16>, vector<24x60xbf16>, vector<256x60xf32> -> vector<256x60xf32>
    %c0_3 = arith.constant 0 : index
    %c0_4 = arith.constant 0 : index
    %3 = vector.load %arg4[%c0_3, %c0_4] : memref<1x60xf32, #tpu.memory_space<vmem>>, vector<1x60xf32>
    %4 = vector.broadcast %3 : vector<1x60xf32> to vector<256x60xf32>
    %5 = arith.addf %2, %4 : vector<256x60xf32>
    %cst_5 = arith.constant 0.000000e+00 : f32
    %6 = vector.broadcast %cst_5 : f32 to vector<256x60xf32>
    %7 = arith.maximumf %5, %6 : vector<256x60xf32>
    %8 = arith.truncf %7 : vector<256x60xf32> to vector<256x60xbf16>
    %c0_6 = arith.constant 0 : index
    %c0_7 = arith.constant 0 : index
    %9 = vector.load %arg5[%c0_6, %c0_7] : memref<60x60xbf16, #tpu.memory_space<vmem>>, vector<60x60xbf16>
    %cst_8 = arith.constant dense<0.000000e+00> : vector<256x60xf32>
    %10 = tpu.matmul %8, %9, %cst_8 {dimension_numbers = #tpu.dot_dimension_numbers<[1], [0], [0], [1], [0, 0, 1, 1], [], []>} : vector<256x60xbf16>, vector<60x60xbf16>, vector<256x60xf32> -> vector<256x60xf32>
    %c0_9 = arith.constant 0 : index
    %c0_10 = arith.constant 0 : index
    %11 = vector.load %arg6[%c0_9, %c0_10] : memref<1x60xf32, #tpu.memory_space<vmem>>, vector<1x60xf32>
    %12 = vector.broadcast %11 : vector<1x60xf32> to vector<256x60xf32>
    %13 = arith.addf %10, %12 : vector<256x60xf32>
    %14 = vector.extract_strided_slice %13 {offsets = [0, 0], sizes = [256, 30], strides = [1, 1]} : vector<256x60xf32> to vector<256x30xf32>
    %15 = vector.extract_strided_slice %13 {offsets = [0, 30], sizes = [256, 30], strides = [1, 1]} : vector<256x60xf32> to vector<256x30xf32>
    %cst_11 = arith.constant 5.000000e-01 : f32
    %16 = vector.broadcast %cst_11 : f32 to vector<256x30xf32>
    %17 = arith.mulf %16, %15 : vector<256x30xf32>
    %18 = math.exp %17 : vector<256x30xf32>
    %c0_12 = arith.constant 0 : index
    %c0_13 = arith.constant 0 : index
    %19 = vector.load %arg2[%c0_12, %c0_13] : memref<256x30xbf16, #tpu.memory_space<vmem>>, vector<256x30xbf16>
    %20 = arith.extf %19 : vector<256x30xbf16> to vector<256x30xf32>
    %21 = arith.mulf %20, %18 : vector<256x30xf32>
    %22 = arith.addf %14, %21 : vector<256x30xf32>
    %23 = arith.truncf %22 : vector<256x30xf32> to vector<256x30xbf16>
    %c0_14 = arith.constant 0 : index
    %c0_15 = arith.constant 0 : index
    %24 = vector.load %arg7[%c0_14, %c0_15] : memref<30x60xbf16, #tpu.memory_space<vmem>>, vector<30x60xbf16>
    %cst_16 = arith.constant dense<0.000000e+00> : vector<256x60xf32>
    %25 = tpu.matmul %23, %24, %cst_16 {dimension_numbers = #tpu.dot_dimension_numbers<[1], [0], [0], [1], [0, 0, 1, 1], [], []>} : vector<256x30xbf16>, vector<30x60xbf16>, vector<256x60xf32> -> vector<256x60xf32>
    %c0_17 = arith.constant 0 : index
    %c0_18 = arith.constant 0 : index
    %26 = vector.load %arg8[%c0_17, %c0_18] : memref<1x60xf32, #tpu.memory_space<vmem>>, vector<1x60xf32>
    %27 = vector.broadcast %26 : vector<1x60xf32> to vector<256x60xf32>
    %28 = arith.addf %25, %27 : vector<256x60xf32>
    %cst_19 = arith.constant 0.000000e+00 : f32
    %29 = vector.broadcast %cst_19 : f32 to vector<256x60xf32>
    %30 = arith.maximumf %28, %29 : vector<256x60xf32>
    %31 = arith.truncf %30 : vector<256x60xf32> to vector<256x60xbf16>
    %c0_20 = arith.constant 0 : index
    %c0_21 = arith.constant 0 : index
    %32 = vector.load %arg9[%c0_20, %c0_21] : memref<60x24xbf16, #tpu.memory_space<vmem>>, vector<60x24xbf16>
    %cst_22 = arith.constant dense<0.000000e+00> : vector<256x24xf32>
    %33 = tpu.matmul %31, %32, %cst_22 {dimension_numbers = #tpu.dot_dimension_numbers<[1], [0], [0], [1], [0, 0, 1, 1], [], []>} : vector<256x60xbf16>, vector<60x24xbf16>, vector<256x24xf32> -> vector<256x24xf32>
    %c0_23 = arith.constant 0 : index
    %c0_24 = arith.constant 0 : index
    %34 = vector.load %arg10[%c0_23, %c0_24] : memref<1x24xf32, #tpu.memory_space<vmem>>, vector<1x24xf32>
    %35 = vector.broadcast %34 : vector<1x24xf32> to vector<256x24xf32>
    %36 = arith.addf %33, %35 : vector<256x24xf32>
    %cst_25 = arith.constant 5.000000e-01 : f32
    %37 = vector.broadcast %cst_25 : f32 to vector<256x24xf32>
    %38 = arith.mulf %37, %36 : vector<256x24xf32>
    %39 = math.tanh %38 : vector<256x24xf32>
    %cst_26 = arith.constant 1.000000e+00 : f32
    %40 = vector.broadcast %cst_26 : f32 to vector<256x24xf32>
    %41 = arith.addf %39, %40 : vector<256x24xf32>
    %cst_27 = arith.constant 5.000000e-01 : f32
    %42 = vector.broadcast %cst_27 : f32 to vector<256x24xf32>
    %43 = arith.mulf %42, %41 : vector<256x24xf32>
    %cst_28 = arith.constant 0.000000e+00 : f32
    %44 = vector.broadcast %cst_28 : f32 to vector<256x44xf32>
    %45 = tpu.concatenate %43, %13, %44 in 1 : vector<256x24xf32>, vector<256x60xf32>, vector<256x44xf32> -> vector<256x128xf32>
    %46 = arith.truncf %45 : vector<256x128xf32> to vector<256x128xbf16>
    %c0_29 = arith.constant 0 : index
    %c0_30 = arith.constant 0 : index
    %47 = vector.load %arg11[%c0_29, %c0_30] : memref<256x128xbf16, #tpu.memory_space<vmem>>, vector<256x128xbf16>
    tpu.vector_store %arg11[%c0_29, %c0_30], %46 {strides = array<i32>} : memref<256x128xbf16, #tpu.memory_space<vmem>>, vector<256x128xbf16>,
    return
  }
  func.func @transform_0(%arg0: i32) -> (i32, i32) {
    %c0_i32 = arith.constant 0 : i32
    %c0_i32_0 = arith.constant 0 : i32
    return %arg0, %c0_i32 : i32, i32
  }
  func.func @transform_1(%arg0: i32) -> (i32, i32) {
    %c0_i32 = arith.constant 0 : i32
    %c0_i32_0 = arith.constant 0 : i32
    return %arg0, %c0_i32 : i32, i32
  }
  func.func @transform_2(%arg0: i32) -> (i32, i32) {
    %c0_i32 = arith.constant 0 : i32
    %c0_i32_0 = arith.constant 0 : i32
    %c0_i32_1 = arith.constant 0 : i32
    return %c0_i32, %c0_i32_0 : i32, i32
  }
  func.func @transform_3(%arg0: i32) -> (i32, i32) {
    %c0_i32 = arith.constant 0 : i32
    %c0_i32_0 = arith.constant 0 : i32
    %c0_i32_1 = arith.constant 0 : i32
    return %c0_i32, %c0_i32_0 : i32, i32
  }
  func.func @transform_4(%arg0: i32) -> (i32, i32) {
    %c0_i32 = arith.constant 0 : i32
    %c0_i32_0 = arith.constant 0 : i32
    %c0_i32_1 = arith.constant 0 : i32
    return %c0_i32, %c0_i32_0 : i32, i32
  }
  func.func @transform_5(%arg0: i32) -> (i32, i32) {
    %c0_i32 = arith.constant 0 : i32
    %c0_i32_0 = arith.constant 0 : i32
    %c0_i32_1 = arith.constant 0 : i32
    return %c0_i32, %c0_i32_0 : i32, i32
  }
  func.func @transform_6(%arg0: i32) -> (i32, i32) {
    %c0_i32 = arith.constant 0 : i32
    %c0_i32_0 = arith.constant 0 : i32
    %c0_i32_1 = arith.constant 0 : i32
    return %c0_i32, %c0_i32_0 : i32, i32
  }
  func.func @transform_7(%arg0: i32) -> (i32, i32) {
    %c0_i32 = arith.constant 0 : i32
    %c0_i32_0 = arith.constant 0 : i32
    %c0_i32_1 = arith.constant 0 : i32
    return %c0_i32, %c0_i32_0 : i32, i32
  }
  func.func @transform_8(%arg0: i32) -> (i32, i32) {
    %c0_i32 = arith.constant 0 : i32
    %c0_i32_0 = arith.constant 0 : i32
    %c0_i32_1 = arith.constant 0 : i32
    return %c0_i32, %c0_i32_0 : i32, i32
  }
  func.func @transform_9(%arg0: i32) -> (i32, i32) {
    %c0_i32 = arith.constant 0 : i32
    %c0_i32_0 = arith.constant 0 : i32
    %c0_i32_1 = arith.constant 0 : i32
    return %c0_i32, %c0_i32_0 : i32, i32
  }
  func.func @transform_10(%arg0: i32) -> (i32, i32) {
    %c0_i32 = arith.constant 0 : i32
    %c0_i32_0 = arith.constant 0 : i32
    return %arg0, %c0_i32 : i32, i32
  }
}

</mosaic_0001>

<llo_original>
// kernel: vae_forward.1
$region0: #{vae_forward.1}
  #allocation0 [shape = 'u32[]', space=smem, size = 0x4, offset = 0x4, fixed_abs, tag = 'smem constant byte address 0x4 - core index']
  #allocation1 [shape = 'u32[144,128]{1,0:T(1,128)}', space=vmem, size = 0x12000, scoped, tag = 'internal scratch']
  %s0 = inlined_call_operand.vmem [shape: bf16[256,24], index: 0, kind: input, shape index: {}]
  %s1 = inlined_call_operand.vmem [shape: bf16[256,30], index: 1, kind: input, shape index: {}]
  %s2 = inlined_call_operand.vmem [shape: bf16[24,60], index: 2, kind: input, shape index: {}]
  %s3 = inlined_call_operand.vmem [shape: f32[1,60], index: 3, kind: input, shape index: {}]
  %s4 = inlined_call_operand.vmem [shape: bf16[60,60], index: 4, kind: input, shape index: {}]
  %s5 = inlined_call_operand.vmem [shape: f32[1,60], index: 5, kind: input, shape index: {}]
  %s6 = inlined_call_operand.vmem [shape: bf16[30,60], index: 6, kind: input, shape index: {}]
  %s7 = inlined_call_operand.vmem [shape: f32[1,60], index: 7, kind: input, shape index: {}]
  %s8 = inlined_call_operand.vmem [shape: bf16[60,24], index: 8, kind: input, shape index: {}]
  %s9 = inlined_call_operand.vmem [shape: f32[1,24], index: 9, kind: input, shape index: {}]
  %s10 = inlined_call_operand.vmem [shape: bf16[256,128], index: 10, kind: output, shape index: {}]
  %s11 = sld [smem:[#allocation0]]
  $region50: #{vae_forward.1} parent=0
    _
  %s13 = ssub.s32 1, %s11
  %s14 = scalar_select 0, %s13, %s11
  // Predicated region
  $region2: #{vae_forward.1} parent=0 // pred_check
    _
  $region3: #{vae_forward.1} parent=0 // pred_check_branch
    %16 = sbr.rel (0) target = $region5
  $region4: #{vae_forward.1} parent=0 // pred_region
    _
  $region5: #{vae_forward.1} parent=0 // pred_fallthru
    _
  // Predicated region
  $region6: #{vae_forward.1} parent=0 // pred_check
    _
  $region7: #{vae_forward.1} parent=0 // pred_check_branch
    %18 = sbr.rel (0) target = $region9
  $region8: #{vae_forward.1} parent=0 // pred_region
    _
  $region9: #{vae_forward.1} parent=0 // pred_fallthru
    _
  // Predicated region
  $region10: #{vae_forward.1} parent=0 // pred_check
    _
  $region11: #{vae_forward.1} parent=0 // pred_check_branch
    %20 = sbr.rel (0) target = $region13
  $region12: #{vae_forward.1} parent=0 // pred_region
    _
  $region13: #{vae_forward.1} parent=0 // pred_fallthru
    _
  // Predicated region
  $region14: #{vae_forward.1} parent=0 // pred_check
    _
  $region15: #{vae_forward.1} parent=0 // pred_check_branch
    %22 = sbr.rel (0) target = $region17
  $region16: #{vae_forward.1} parent=0 // pred_region
    _
  $region17: #{vae_forward.1} parent=0 // pred_fallthru
    _
  // Predicated region
  $region18: #{vae_forward.1} parent=0 // pred_check
    _
  $region19: #{vae_forward.1} parent=0 // pred_check_branch
    %24 = sbr.rel (0) target = $region21
  $region20: #{vae_forward.1} parent=0 // pred_region
    _
  $region21: #{vae_forward.1} parent=0 // pred_fallthru
    _
  // Predicated region
  $region22: #{vae_forward.1} parent=0 // pred_check
    _
  $region23: #{vae_forward.1} parent=0 // pred_check_branch
    %26 = sbr.rel (0) target = $region25
  $region24: #{vae_forward.1} parent=0 // pred_region
    _
  $region25: #{vae_forward.1} parent=0 // pred_fallthru
    _
  // Predicated region
  $region26: #{vae_forward.1} parent=0 // pred_check
    _
  $region27: #{vae_forward.1} parent=0 // pred_check_branch
    %28 = sbr.rel (0) target = $region29
  $region28: #{vae_forward.1} parent=0 // pred_region
    _
  $region29: #{vae_forward.1} parent=0 // pred_fallthru
    _
  // Predicated region
  $region30: #{vae_forward.1} parent=0 // pred_check
    _
  $region31: #{vae_forward.1} parent=0 // pred_check_branch
    %30 = sbr.rel (0) target = $region33
  $region32: #{vae_forward.1} parent=0 // pred_region
    _
  $region33: #{vae_forward.1} parent=0 // pred_fallthru
    _
  // Predicated region
  $region34: #{vae_forward.1} parent=0 // pred_check
    _
  $region35: #{vae_forward.1} parent=0 // pred_check_branch
    %32 = sbr.rel (0) target = $region37
  $region36: #{vae_forward.1} parent=0 // pred_region
    _
  $region37: #{vae_forward.1} parent=0 // pred_fallthru
    _
  // Predicated region
  $region38: #{vae_forward.1} parent=0 // pred_check
    _
  $region39: #{vae_forward.1} parent=0 // pred_check_branch
    %34 = sbr.rel (0) target = $region41
  $region40: #{vae_forward.1} parent=0 // pred_region
    _
  $region41: #{vae_forward.1} parent=0 // pred_fallthru
    _
  %v36 = vld [vmem:[%s0] sm:$0xf]
  %v37 = vld [vmem:[%s0 + $0x4] sm:$0xf]
  %v38 = vld [vmem:[%s0 + $0x8] sm:$0xf]
  %v39 = vld [vmem:[%s0 + $0xc] sm:$0xf]
  %v40 = vld [vmem:[%s0 + $0x10] sm:$0xf]
  %v41 = vld [vmem:[%s0 + $0x14] sm:$0xf]
  %v42 = vld [vmem:[%s0 + $0x18] sm:$0xf]
  %v43 = vld [vmem:[%s0 + $0x1c] sm:$0xf]
  %v44 = vld [vmem:[%s0 + $0x20] sm:$0xf]
  %v45 = vld [vmem:[%s0 + $0x24] sm:$0xf]
  %v46 = vld [vmem:[%s0 + $0x28] sm:$0xf]
  %v47 = vld [vmem:[%s0 + $0x2c] sm:$0xf]
  %v48 = vld [vmem:[%s0 + $0x30] sm:$0xf]
  %v49 = vld [vmem:[%s0 + $0x34] sm:$0xf]
  %v50 = vld [vmem:[%s0 + $0x38] sm:$0xf]
  %v51 = vld [vmem:[%s0 + $0x3c] sm:$0xf]
  %v52 = vld [vmem:[%s0 + $0x40] sm:$0xf]
  %v53 = vld [vmem:[%s0 + $0x44] sm:$0xf]
  %v54 = vld [vmem:[%s0 + $0x48] sm:$0xf]
  %v55 = vld [vmem:[%s0 + $0x4c] sm:$0xf]
  %v56 = vld [vmem:[%s0 + $0x50] sm:$0xf]
  %v57 = vld [vmem:[%s0 + $0x54] sm:$0xf]
  %v58 = vld [vmem:[%s0 + $0x58] sm:$0xf]
  %v59 = vld [vmem:[%s0 + $0x5c] sm:$0xf]
  %v60 = vld [vmem:[%s0 + $0x60] sm:$0xf]
  %v61 = vld [vmem:[%s0 + $0x64] sm:$0xf]
  %v62 = vld [vmem:[%s0 + $0x68] sm:$0xf]
  %v63 = vld [vmem:[%s0 + $0x6c] sm:$0xf]
  %v64 = vld [vmem:[%s0 + $0x70] sm:$0xf]
  %v65 = vld [vmem:[%s0 + $0x74] sm:$0xf]
  %v66 = vld [vmem:[%s0 + $0x78] sm:$0xf]
  %v67 = vld [vmem:[%s0 + $0x7c] sm:$0xf]
  %v68 = vld [vmem:[%s2] sm:$0xf]
  %v69 = vld [vmem:[%s2 + $0x4] sm:$0xf]
  %v70 = vld [vmem:[%s2 + $0x8] sm:$0xf]
  %v71 = vld [vmem:[%s3] sm:$0x1]
  %v73 = vlaneseq
  %v74 = vshrl.u32 %v73, 7
  %v75 = vsub.s32 0, %v74
  %v76 = vrot.slane %v71, %v75
  %v110 = vunpack.c.l.b16 %v36
  %v111 = vunpack.c.l.b16 %v37
  %v112 = vunpack.c.l.b16 %v38
  %v113 = vunpack.c.l.b16 %v39
  %v114 = vunpack.c.l.b16 %v40
  %v115 = vunpack.c.l.b16 %v41
  %v116 = vunpack.c.l.b16 %v42
  %v117 = vunpack.c.l.b16 %v43
  %v118 = vunpack.c.l.b16 %v44
  %v119 = vunpack.c.l.b16 %v45
  %v120 = vunpack.c.l.b16 %v46
  %v121 = vunpack.c.l.b16 %v47
  %v122 = vunpack.c.l.b16 %v48
  %v123 = vunpack.c.l.b16 %v49
  %v124 = vunpack.c.l.b16 %v50
  %v125 = vunpack.c.l.b16 %v51
  %v126 = vunpack.c.l.b16 %v52
  %v127 = vunpack.c.l.b16 %v53
  %v128 = vunpack.c.l.b16 %v54
  %v129 = vunpack.c.l.b16 %v55
  %v130 = vunpack.c.l.b16 %v56
  %v131 = vunpack.c.l.b16 %v57
  %v132 = vunpack.c.l.b16 %v58
  %v133 = vunpack.c.l.b16 %v59
  %v134 = vunpack.c.l.b16 %v60
  %v135 = vunpack.c.l.b16 %v61
  %v136 = vunpack.c.l.b16 %v62
  %v137 = vunpack.c.l.b16 %v63
  %v138 = vunpack.c.l.b16 %v64
  %v139 = vunpack.c.l.b16 %v65
  %v140 = vunpack.c.l.b16 %v66
  %v141 = vunpack.c.l.b16 %v67
  %v142 = vpack.c.b16 %v111, %v110
  %v143 = vpack.c.b16 %v113, %v112
  %v144 = vpack.c.b16 %v115, %v114
  %v145 = vpack.c.b16 %v117, %v116
  %v146 = vpack.c.b16 %v119, %v118
  %v147 = vpack.c.b16 %v121, %v120
  %v148 = vpack.c.b16 %v123, %v122
  %v149 = vpack.c.b16 %v125, %v124
  %v150 = vpack.c.b16 %v127, %v126
  %v151 = vpack.c.b16 %v129, %v128
  %v152 = vpack.c.b16 %v131, %v130
  %v153 = vpack.c.b16 %v133, %v132
  %v154 = vpack.c.b16 %v135, %v134
  %v155 = vpack.c.b16 %v137, %v136
  %v156 = vpack.c.b16 %v139, %v138
  %v157 = vpack.c.b16 %v141, %v140
  %v161 = vunpack.c.l.b16 %v68
  %v162 = vunpack.c.l.b16 %v69
  %v163 = vunpack.c.l.b16 %v70
  %v164 = vpack.c.b16 %v162, %v161
  %v165 = vpack.c.b16 %v163, %v163
  %vm167 = vcmask 195584
  %v169 = vsel %vm167, %v142, 0
  %v172 = vsel %vm167, %v143, 0
  %v175 = vsel %vm167, %v144, 0
  %v178 = vsel %vm167, %v145, 0
  %v181 = vsel %vm167, %v146, 0
  %v184 = vsel %vm167, %v147, 0
  %v187 = vsel %vm167, %v148, 0
  %v190 = vsel %vm167, %v149, 0
  %v193 = vsel %vm167, %v150, 0
  %v196 = vsel %vm167, %v151, 0
  %v199 = vsel %vm167, %v152, 0
  %v202 = vsel %vm167, %v153, 0
  %v205 = vsel %vm167, %v154, 0
  %v208 = vsel %vm167, %v155, 0
  %v211 = vsel %vm167, %v156, 0
  %v214 = vsel %vm167, %v157, 0
  %vm216 = vcmask 1043456
  %v218 = vsel %vm216, %v165, 0
  %220 = vmatprep.subr.bf16.mxu0 0
  %221 = vmatpush1.bf16.msra.mxu0 0
  %222 = vmatprep.subr.bf16.mxu0 0
  %223 = vmatpush1.bf16.msra.mxu0 0
  %224 = vmatprep.subr.bf16.mxu0 0
  %225 = vmatpush1.bf16.msra.mxu0 0
  %226 = vmatprep.subr.bf16.mxu0 0
  %227 = vmatpush1.bf16.msra.mxu0 0
  %228 = vmatprep.subr.bf16.mxu0 0
  %229 = vmatpush1.bf16.msra.mxu0 0
  %230 = vmatprep.subr.bf16.mxu0 0
  %231 = vmatpush1.bf16.msra.mxu0 0
  %232 = vmatprep.subr.bf16.mxu0 0
  %233 = vmatpush1.bf16.msra.mxu0 %v218
  %234 = vmatprep.subr.bf16.mxu0 0
  %235 = vmatpush1.bf16.msra.mxu0 %v164
  %236 = vmatprep.subr.bf16.mxu0 0
  %237 = vmatpush2.bf16.msra.mxu0 0
  %238 = vmatprep.subr.bf16.mxu0 0
  %239 = vmatpush2.bf16.msra.mxu0 0
  %240 = vmatprep.subr.bf16.mxu0 0
  %241 = vmatpush2.bf16.msra.mxu0 0
  %242 = vmatprep.subr.bf16.mxu0 0
  %243 = vmatpush2.bf16.msra.mxu0 0
  %244 = vmatprep.subr.bf16.mxu0 0
  %245 = vmatpush2.bf16.msra.mxu0 0
  %246 = vmatprep.subr.bf16.mxu0 0
  %247 = vmatpush2.bf16.msra.mxu0 0
  %248 = vmatprep.subr.bf16.mxu0 0
  %249 = vmatpush2.bf16.msra.mxu0 0
  %250 = vmatprep.subr.bf16.mxu0 0
  %251 = vmatpush2.bf16.msra.mxu0 0
  %252 = vmatprep.mubr.bf16.mxu0 0
  %253 = vmatmul.mubr.bf16.gmra.mxu0 %v169
  %v254 = vpop.f32.mrf.mxu0
  %v255 = vadd.f32 %v76, %v254
  %v256 = vpop.f32.mrf.mxu0
  %v257 = vpop.f32.mrf.mxu0
  %v258 = vadd.f32 %v76, %v257
  %v259 = vpop.f32.mrf.mxu0
  %260 = vmatprep.mubr.bf16.mxu0 0
  %261 = vmatmul.mubr.bf16.gmra.mxu0 %v172
  %v262 = vpop.f32.mrf.mxu0
  %v263 = vadd.f32 %v76, %v262
  %v264 = vpop.f32.mrf.mxu0
  %v265 = vpop.f32.mrf.mxu0
  %v266 = vadd.f32 %v76, %v265
  %v267 = vpop.f32.mrf.mxu0
  %268 = vmatprep.mubr.bf16.mxu0 0
  %269 = vmatmul.mubr.bf16.gmra.mxu0 %v175
  %v270 = vpop.f32.mrf.mxu0
  %v271 = vadd.f32 %v76, %v270
  %v272 = vpop.f32.mrf.mxu0
  %v273 = vpop.f32.mrf.mxu0
  %v274 = vadd.f32 %v76, %v273
  %v275 = vpop.f32.mrf.mxu0
  %276 = vmatprep.mubr.bf16.mxu0 0
  %277 = vmatmul.mubr.bf16.gmra.mxu0 %v178
  %v278 = vpop.f32.mrf.mxu0
  %v279 = vadd.f32 %v76, %v278
  %v280 = vpop.f32.mrf.mxu0
  %v281 = vpop.f32.mrf.mxu0
  %v282 = vadd.f32 %v76, %v281
  %v283 = vpop.f32.mrf.mxu0
  %284 = vmatprep.mubr.bf16.mxu0 0
  %285 = vmatmul.mubr.bf16.gmra.mxu0 %v181
  %v286 = vpop.f32.mrf.mxu0
  %v287 = vadd.f32 %v76, %v286
  %v288 = vpop.f32.mrf.mxu0
  %v289 = vpop.f32.mrf.mxu0
  %v290 = vadd.f32 %v76, %v289
  %v291 = vpop.f32.mrf.mxu0
  %292 = vmatprep.mubr.bf16.mxu0 0
  %293 = vmatmul.mubr.bf16.gmra.mxu0 %v184
  %v294 = vpop.f32.mrf.mxu0
  %v295 = vadd.f32 %v76, %v294
  %v296 = vpop.f32.mrf.mxu0
  %v297 = vpop.f32.mrf.mxu0
  %v298 = vadd.f32 %v76, %v297
  %v299 = vpop.f32.mrf.mxu0
  %300 = vmatprep.mubr.bf16.mxu0 0
  %301 = vmatmul.mubr.bf16.gmra.mxu0 %v187
  %v302 = vpop.f32.mrf.mxu0
  %v303 = vadd.f32 %v76, %v302
  %v304 = vpop.f32.mrf.mxu0
  %v305 = vpop.f32.mrf.mxu0
  %v306 = vadd.f32 %v76, %v305
  %v307 = vpop.f32.mrf.mxu0
  %308 = vmatprep.mubr.bf16.mxu0 0
  %309 = vmatmul.mubr.bf16.gmra.mxu0 %v190
  %v310 = vpop.f32.mrf.mxu0
  %v311 = vadd.f32 %v76, %v310
  %v312 = vpop.f32.mrf.mxu0
  %v313 = vpop.f32.mrf.mxu0
  %v314 = vadd.f32 %v76, %v313
  %v315 = vpop.f32.mrf.mxu0
  %316 = vmatprep.mubr.bf16.mxu0 0
  %317 = vmatmul.mubr.bf16.gmra.mxu0 %v193
  %v318 = vpop.f32.mrf.mxu0
  %v319 = vadd.f32 %v76, %v318
  %v320 = vpop.f32.mrf.mxu0
  %v321 = vpop.f32.mrf.mxu0
  %v322 = vadd.f32 %v76, %v321
  %v323 = vpop.f32.mrf.mxu0
  %324 = vmatprep.mubr.bf16.mxu0 0
  %325 = vmatmul.mubr.bf16.gmra.mxu0 %v196
  %v326 = vpop.f32.mrf.mxu0
  %v327 = vadd.f32 %v76, %v326
  %v328 = vpop.f32.mrf.mxu0
  %v329 = vpop.f32.mrf.mxu0
  %v330 = vadd.f32 %v76, %v329
  %v331 = vpop.f32.mrf.mxu0
  %332 = vmatprep.mubr.bf16.mxu0 0
  %333 = vmatmul.mubr.bf16.gmra.mxu0 %v199
  %v334 = vpop.f32.mrf.mxu0
  %v335 = vadd.f32 %v76, %v334
  %v336 = vpop.f32.mrf.mxu0
  %v337 = vpop.f32.mrf.mxu0
  %v338 = vadd.f32 %v76, %v337
  %v339 = vpop.f32.mrf.mxu0
  %340 = vmatprep.mubr.bf16.mxu0 0
  %341 = vmatmul.mubr.bf16.gmra.mxu0 %v202
  %v342 = vpop.f32.mrf.mxu0
  %v343 = vadd.f32 %v76, %v342
  %v344 = vpop.f32.mrf.mxu0
  %v345 = vpop.f32.mrf.mxu0
  %v346 = vadd.f32 %v76, %v345
  %v347 = vpop.f32.mrf.mxu0
  %348 = vmatprep.mubr.bf16.mxu0 0
  %349 = vmatmul.mubr.bf16.gmra.mxu0 %v205
  %v350 = vpop.f32.mrf.mxu0
  %v351 = vadd.f32 %v76, %v350
  %v352 = vpop.f32.mrf.mxu0
  %v353 = vpop.f32.mrf.mxu0
  %v354 = vadd.f32 %v76, %v353
  %v355 = vpop.f32.mrf.mxu0
  %356 = vmatprep.mubr.bf16.mxu0 0
  %357 = vmatmul.mubr.bf16.gmra.mxu0 %v208
  %v358 = vpop.f32.mrf.mxu0
  %v359 = vadd.f32 %v76, %v358
  %v360 = vpop.f32.mrf.mxu0
  %v361 = vpop.f32.mrf.mxu0
  %v362 = vadd.f32 %v76, %v361
  %v363 = vpop.f32.mrf.mxu0
  %364 = vmatprep.mubr.bf16.mxu0 0
  %365 = vmatmul.mubr.bf16.gmra.mxu0 %v211
  %v366 = vpop.f32.mrf.mxu0
  %v367 = vadd.f32 %v76, %v366
  %v368 = vpop.f32.mrf.mxu0
  %v369 = vpop.f32.mrf.mxu0
  %v370 = vadd.f32 %v76, %v369
  %v371 = vpop.f32.mrf.mxu0
  %372 = vmatprep.mubr.bf16.mxu0 0
  %373 = vmatmul.mubr.bf16.gmra.mxu0 %v214
  %v374 = vpop.f32.mrf.mxu0
  %v375 = vadd.f32 %v76, %v374
  %v376 = vpop.f32.mrf.mxu0
  %v377 = vpop.f32.mrf.mxu0
  %v378 = vadd.f32 %v76, %v377
  %v379 = vpop.f32.mrf.mxu0
  %380 = vdwg.mxu0
  %v381 = vmax.f32 %v255, 0.0
  %v382 = vmax.f32 %v258, 0.0
  %v383 = vmax.f32 %v263, 0.0
  %v384 = vmax.f32 %v266, 0.0
  %v385 = vmax.f32 %v271, 0.0
  %v386 = vmax.f32 %v274, 0.0
  %v387 = vmax.f32 %v279, 0.0
  %v388 = vmax.f32 %v282, 0.0
  %v389 = vmax.f32 %v287, 0.0
  %v390 = vmax.f32 %v290, 0.0
  %v391 = vmax.f32 %v295, 0.0
  %v392 = vmax.f32 %v298, 0.0
  %v393 = vmax.f32 %v303, 0.0
  %v394 = vmax.f32 %v306, 0.0
  %v395 = vmax.f32 %v311, 0.0
  %v396 = vmax.f32 %v314, 0.0
  %v397 = vmax.f32 %v319, 0.0
  %v398 = vmax.f32 %v322, 0.0
  %v399 = vmax.f32 %v327, 0.0
  %v400 = vmax.f32 %v330, 0.0
  %v401 = vmax.f32 %v335, 0.0
  %v402 = vmax.f32 %v338, 0.0
  %v403 = vmax.f32 %v343, 0.0
  %v404 = vmax.f32 %v346, 0.0
  %v405 = vmax.f32 %v351, 0.0
  %v406 = vmax.f32 %v354, 0.0
  %v407 = vmax.f32 %v359, 0.0
  %v408 = vmax.f32 %v362, 0.0
  %v409 = vmax.f32 %v367, 0.0
  %v410 = vmax.f32 %v370, 0.0
  %v411 = vmax.f32 %v375, 0.0
  %v412 = vmax.f32 %v378, 0.0
  %v413 = vpack.c.bf16 %v382, %v381
  %v414 = vpack.c.bf16 %v384, %v383
  %v415 = vpack.c.bf16 %v386, %v385
  %v416 = vpack.c.bf16 %v388, %v387
  %v417 = vpack.c.bf16 %v390, %v389
  %v418 = vpack.c.bf16 %v392, %v391
  %v419 = vpack.c.bf16 %v394, %v393
  %v420 = vpack.c.bf16 %v396, %v395
  %v421 = vpack.c.bf16 %v398, %v397
  %v422 = vpack.c.bf16 %v400, %v399
  %v423 = vpack.c.bf16 %v402, %v401
  %v424 = vpack.c.bf16 %v404, %v403
  %v425 = vpack.c.bf16 %v406, %v405
  %v426 = vpack.c.bf16 %v408, %v407
  %v427 = vpack.c.bf16 %v410, %v409
  %v428 = vpack.c.bf16 %v412, %v411
  %v429 = vld [vmem:[%s4] sm:$0xf]
  %v430 = vld [vmem:[%s4 + $0x4] sm:$0xf]
  %v431 = vld [vmem:[%s4 + $0x8] sm:$0xf]
  %v432 = vld [vmem:[%s4 + $0xc] sm:$0xf]
  %v433 = vld [vmem:[%s4 + $0x10] sm:$0xf]
  %v434 = vld [vmem:[%s4 + $0x14] sm:$0xf]
  %v435 = vld [vmem:[%s4 + $0x18] sm:$0xf]
  %v436 = vld [vmem:[%s4 + $0x1c] sm:$0x3]
  %v437 = vld [vmem:[%s5] sm:$0x1]
  %v439 = vlaneseq
  %v440 = vshrl.u32 %v439, 7
  %v441 = vsub.s32 0, %v440
  %v442 = vrot.slane %v437, %v441
  %v452 = vunpack.c.l.b16 %v429
  %v453 = vunpack.c.l.b16 %v430
  %v454 = vunpack.c.l.b16 %v431
  %v455 = vunpack.c.l.b16 %v432
  %v456 = vunpack.c.l.b16 %v433
  %v457 = vunpack.c.l.b16 %v434
  %v458 = vunpack.c.l.b16 %v435
  %v459 = vunpack.c.l.b16 %v436
  %v460 = vpack.c.b16 %v453, %v452
  %v461 = vpack.c.b16 %v455, %v454
  %v462 = vpack.c.b16 %v457, %v456
  %v463 = vpack.c.b16 %v459, %v458
  %vm467 = vcmask 490496
  %v469 = vsel %vm467, %v413, 0
  %v472 = vsel %vm467, %v414, 0
  %v475 = vsel %vm467, %v415, 0
  %v478 = vsel %vm467, %v416, 0
  %v481 = vsel %vm467, %v417, 0
  %v484 = vsel %vm467, %v418, 0
  %v487 = vsel %vm467, %v419, 0
  %v490 = vsel %vm467, %v420, 0
  %v493 = vsel %vm467, %v421, 0
  %v496 = vsel %vm467, %v422, 0
  %v499 = vsel %vm467, %v423, 0
  %v502 = vsel %vm467, %v424, 0
  %v505 = vsel %vm467, %v425, 0
  %v508 = vsel %vm467, %v426, 0
  %v511 = vsel %vm467, %v427, 0
  %v514 = vsel %vm467, %v428, 0
  %vm516 = vcmask 1045504
  %v518 = vsel %vm516, %v463, 0
  %520 = vmatprep.subr.bf16.mxu0 0
  %521 = vmatpush1.bf16.msra.mxu0 0
  %522 = vmatprep.subr.bf16.mxu0 0
  %523 = vmatpush1.bf16.msra.mxu0 0
  %524 = vmatprep.subr.bf16.mxu0 0
  %525 = vmatpush1.bf16.msra.mxu0 0
  %526 = vmatprep.subr.bf16.mxu0 0
  %527 = vmatpush1.bf16.msra.mxu0 0
  %528 = vmatprep.subr.bf16.mxu0 0
  %529 = vmatpush1.bf16.msra.mxu0 %v518
  %530 = vmatprep.subr.bf16.mxu0 0
  %531 = vmatpush1.bf16.msra.mxu0 %v462
  %532 = vmatprep.subr.bf16.mxu0 0
  %533 = vmatpush1.bf16.msra.mxu0 %v461
  %534 = vmatprep.subr.bf16.mxu0 0
  %535 = vmatpush1.bf16.msra.mxu0 %v460
  %536 = vmatprep.subr.bf16.mxu0 0
  %537 = vmatpush2.bf16.msra.mxu0 0
  %538 = vmatprep.subr.bf16.mxu0 0
  %539 = vmatpush2.bf16.msra.mxu0 0
  %540 = vmatprep.subr.bf16.mxu0 0
  %541 = vmatpush2.bf16.msra.mxu0 0
  %542 = vmatprep.subr.bf16.mxu0 0
  %543 = vmatpush2.bf16.msra.mxu0 0
  %544 = vmatprep.subr.bf16.mxu0 0
  %545 = vmatpush2.bf16.msra.mxu0 0
  %546 = vmatprep.subr.bf16.mxu0 0
  %547 = vmatpush2.bf16.msra.mxu0 0
  %548 = vmatprep.subr.bf16.mxu0 0
  %549 = vmatpush2.bf16.msra.mxu0 0
  %550 = vmatprep.subr.bf16.mxu0 0
  %551 = vmatpush2.bf16.msra.mxu0 0
  %552 = vmatprep.mubr.bf16.mxu0 0
  %553 = vmatmul.mubr.bf16.gmra.mxu0 %v469
  %v554 = vpop.f32.mrf.mxu0
  %v555 = vadd.f32 %v442, %v554
  %v556 = vpop.f32.mrf.mxu0
  %v557 = vpop.f32.mrf.mxu0
  %v558 = vadd.f32 %v442, %v557
  %v559 = vpop.f32.mrf.mxu0
  %560 = vmatprep.mubr.bf16.mxu0 0
  %561 = vmatmul.mubr.bf16.gmra.mxu0 %v472
  %v562 = vpop.f32.mrf.mxu0
  %v563 = vadd.f32 %v442, %v562
  %v564 = vpop.f32.mrf.mxu0
  %v565 = vpop.f32.mrf.mxu0
  %v566 = vadd.f32 %v442, %v565
  %v567 = vpop.f32.mrf.mxu0
  %568 = vmatprep.mubr.bf16.mxu0 0
  %569 = vmatmul.mubr.bf16.gmra.mxu0 %v475
  %v570 = vpop.f32.mrf.mxu0
  %v571 = vadd.f32 %v442, %v570
  %v572 = vpop.f32.mrf.mxu0
  %v573 = vpop.f32.mrf.mxu0
  %v574 = vadd.f32 %v442, %v573
  %v575 = vpop.f32.mrf.mxu0
  %576 = vmatprep.mubr.bf16.mxu0 0
  %577 = vmatmul.mubr.bf16.gmra.mxu0 %v478
  %v578 = vpop.f32.mrf.mxu0
  %v579 = vadd.f32 %v442, %v578
  %v580 = vpop.f32.mrf.mxu0
  %v581 = vpop.f32.mrf.mxu0
  %v582 = vadd.f32 %v442, %v581
  %v583 = vpop.f32.mrf.mxu0
  %584 = vmatprep.mubr.bf16.mxu0 0
  %585 = vmatmul.mubr.bf16.gmra.mxu0 %v481
  %v586 = vpop.f32.mrf.mxu0
  %v587 = vadd.f32 %v442, %v586
  %v588 = vpop.f32.mrf.mxu0
  %v589 = vpop.f32.mrf.mxu0
  %v590 = vadd.f32 %v442, %v589
  %v591 = vpop.f32.mrf.mxu0
  %592 = vmatprep.mubr.bf16.mxu0 0
  %593 = vmatmul.mubr.bf16.gmra.mxu0 %v484
  %v594 = vpop.f32.mrf.mxu0
  %v595 = vadd.f32 %v442, %v594
  %v596 = vpop.f32.mrf.mxu0
  %v597 = vpop.f32.mrf.mxu0
  %v598 = vadd.f32 %v442, %v597
  %v599 = vpop.f32.mrf.mxu0
  %600 = vmatprep.mubr.bf16.mxu0 0
  %601 = vmatmul.mubr.bf16.gmra.mxu0 %v487
  %v602 = vpop.f32.mrf.mxu0
  %v603 = vadd.f32 %v442, %v602
  %v604 = vpop.f32.mrf.mxu0
  %v605 = vpop.f32.mrf.mxu0
  %v606 = vadd.f32 %v442, %v605
  %v607 = vpop.f32.mrf.mxu0
  %608 = vmatprep.mubr.bf16.mxu0 0
  %609 = vmatmul.mubr.bf16.gmra.mxu0 %v490
  %v610 = vpop.f32.mrf.mxu0
  %v611 = vadd.f32 %v442, %v610
  %v612 = vpop.f32.mrf.mxu0
  %v613 = vpop.f32.mrf.mxu0
  %v614 = vadd.f32 %v442, %v613
  %v615 = vpop.f32.mrf.mxu0
  %616 = vmatprep.mubr.bf16.mxu0 0
  %617 = vmatmul.mubr.bf16.gmra.mxu0 %v493
  %v618 = vpop.f32.mrf.mxu0
  %v619 = vadd.f32 %v442, %v618
  %v620 = vpop.f32.mrf.mxu0
  %v621 = vpop.f32.mrf.mxu0
  %v622 = vadd.f32 %v442, %v621
  %v623 = vpop.f32.mrf.mxu0
  %624 = vmatprep.mubr.bf16.mxu0 0
  %625 = vmatmul.mubr.bf16.gmra.mxu0 %v496
  %v626 = vpop.f32.mrf.mxu0
  %v627 = vadd.f32 %v442, %v626
  %v628 = vpop.f32.mrf.mxu0
  %v629 = vpop.f32.mrf.mxu0
  %v630 = vadd.f32 %v442, %v629
  %v631 = vpop.f32.mrf.mxu0
  %632 = vmatprep.mubr.bf16.mxu0 0
  %633 = vmatmul.mubr.bf16.gmra.mxu0 %v499
  %v634 = vpop.f32.mrf.mxu0
  %v635 = vadd.f32 %v442, %v634
  %v636 = vpop.f32.mrf.mxu0
  %v637 = vpop.f32.mrf.mxu0
  %v638 = vadd.f32 %v442, %v637
  %v639 = vpop.f32.mrf.mxu0
  %640 = vmatprep.mubr.bf16.mxu0 0
  %641 = vmatmul.mubr.bf16.gmra.mxu0 %v502
  %v642 = vpop.f32.mrf.mxu0
  %v643 = vadd.f32 %v442, %v642
  %v644 = vpop.f32.mrf.mxu0
  %v645 = vpop.f32.mrf.mxu0
  %v646 = vadd.f32 %v442, %v645
  %v647 = vpop.f32.mrf.mxu0
  %648 = vmatprep.mubr.bf16.mxu0 0
  %649 = vmatmul.mubr.bf16.gmra.mxu0 %v505
  %v650 = vpop.f32.mrf.mxu0
  %v651 = vadd.f32 %v442, %v650
  %v652 = vpop.f32.mrf.mxu0
  %v653 = vpop.f32.mrf.mxu0
  %v654 = vadd.f32 %v442, %v653
  %v655 = vpop.f32.mrf.mxu0
  %656 = vmatprep.mubr.bf16.mxu0 0
  %657 = vmatmul.mubr.bf16.gmra.mxu0 %v508
  %v658 = vpop.f32.mrf.mxu0
  %v659 = vadd.f32 %v442, %v658
  %v660 = vpop.f32.mrf.mxu0
  %v661 = vpop.f32.mrf.mxu0
  %v662 = vadd.f32 %v442, %v661
  %v663 = vpop.f32.mrf.mxu0
  %664 = vmatprep.mubr.bf16.mxu0 0
  %665 = vmatmul.mubr.bf16.gmra.mxu0 %v511
  %v666 = vpop.f32.mrf.mxu0
  %v667 = vadd.f32 %v442, %v666
  %v668 = vpop.f32.mrf.mxu0
  %v669 = vpop.f32.mrf.mxu0
  %v670 = vadd.f32 %v442, %v669
  %v671 = vpop.f32.mrf.mxu0
  %672 = vmatprep.mubr.bf16.mxu0 0
  %673 = vmatmul.mubr.bf16.gmra.mxu0 %v514
  %v674 = vpop.f32.mrf.mxu0
  %v675 = vadd.f32 %v442, %v674
  %v676 = vpop.f32.mrf.mxu0
  %v677 = vpop.f32.mrf.mxu0
  %v678 = vadd.f32 %v442, %v677
  %v679 = vpop.f32.mrf.mxu0
  %680 = vdwg.mxu0
  %v681 = vmul.f32 %v555, 0.5
  %v682 = vmul.f32 %v558, 0.5
  %v683 = vmul.f32 %v563, 0.5
  %v684 = vmul.f32 %v566, 0.5
  %v685 = vmul.f32 %v571, 0.5
  %v686 = vmul.f32 %v574, 0.5
  %v687 = vmul.f32 %v579, 0.5
  %v688 = vmul.f32 %v582, 0.5
  %v689 = vmul.f32 %v587, 0.5
  %v690 = vmul.f32 %v590, 0.5
  %v691 = vmul.f32 %v595, 0.5
  %v692 = vmul.f32 %v598, 0.5
  %v693 = vmul.f32 %v603, 0.5
  %v694 = vmul.f32 %v606, 0.5
  %v695 = vmul.f32 %v611, 0.5
  %v696 = vmul.f32 %v614, 0.5
  %v697 = vmul.f32 %v619, 0.5
  %v698 = vmul.f32 %v622, 0.5
  %v699 = vmul.f32 %v627, 0.5
  %v700 = vmul.f32 %v630, 0.5
  %v701 = vmul.f32 %v635, 0.5
  %v702 = vmul.f32 %v638, 0.5
  %v703 = vmul.f32 %v643, 0.5
  %v704 = vmul.f32 %v646, 0.5
  %v705 = vmul.f32 %v651, 0.5
  %v706 = vmul.f32 %v654, 0.5
  %v707 = vmul.f32 %v659, 0.5
  %v708 = vmul.f32 %v662, 0.5
  %v709 = vmul.f32 %v667, 0.5
  %v710 = vmul.f32 %v670, 0.5
  %v711 = vmul.f32 %v675, 0.5
  %v712 = vmul.f32 %v678, 0.5
  %v713 = vmul.f32 %v681, 1.442695
  %v714 = vpow.pop %v713
  %v715 = vmul.f32 %v682, 1.442695
  %v716 = vpow.pop %v715
  %v717 = vmul.f32 %v683, 1.442695
  %v718 = vpow.pop %v717
  %v719 = vmul.f32 %v684, 1.442695
  %v720 = vpow.pop %v719
  %v721 = vmul.f32 %v685, 1.442695
  %v722 = vpow.pop %v721
  %v723 = vmul.f32 %v686, 1.442695
  %v724 = vpow.pop %v723
  %v725 = vmul.f32 %v687, 1.442695
  %v726 = vpow.pop %v725
  %v727 = vmul.f32 %v688, 1.442695
  %v728 = vpow.pop %v727
  %v729 = vmul.f32 %v689, 1.442695
  %v730 = vpow.pop %v729
  %v731 = vmul.f32 %v690, 1.442695
  %v732 = vpow.pop %v731
  %v733 = vmul.f32 %v691, 1.442695
  %v734 = vpow.pop %v733
  %v735 = vmul.f32 %v692, 1.442695
  %v736 = vpow.pop %v735
  %v737 = vmul.f32 %v693, 1.442695
  %v738 = vpow.pop %v737
  %v739 = vmul.f32 %v694, 1.442695
  %v740 = vpow.pop %v739
  %v741 = vmul.f32 %v695, 1.442695
  %v742 = vpow.pop %v741
  %v743 = vmul.f32 %v696, 1.442695
  %v744 = vpow.pop %v743
  %v745 = vmul.f32 %v697, 1.442695
  %v746 = vpow.pop %v745
  %v747 = vmul.f32 %v698, 1.442695
  %v748 = vpow.pop %v747
  %v749 = vmul.f32 %v699, 1.442695
  %v750 = vpow.pop %v749
  %v751 = vmul.f32 %v700, 1.442695
  %v752 = vpow.pop %v751
  %v753 = vmul.f32 %v701, 1.442695
  %v754 = vpow.pop %v753
  %v755 = vmul.f32 %v702, 1.442695
  %v756 = vpow.pop %v755
  %v757 = vmul.f32 %v703, 1.442695
  %v758 = vpow.pop %v757
  %v759 = vmul.f32 %v704, 1.442695
  %v760 = vpow.pop %v759
  %v761 = vmul.f32 %v705, 1.442695
  %v762 = vpow.pop %v761
  %v763 = vmul.f32 %v706, 1.442695
  %v764 = vpow.pop %v763
  %v765 = vmul.f32 %v707, 1.442695
  %v766 = vpow.pop %v765
  %v767 = vmul.f32 %v708, 1.442695
  %v768 = vpow.pop %v767
  %v769 = vmul.f32 %v709, 1.442695
  %v770 = vpow.pop %v769
  %v771 = vmul.f32 %v710, 1.442695
  %v772 = vpow.pop %v771
  %v773 = vmul.f32 %v711, 1.442695
  %v774 = vpow.pop %v773
  %v775 = vmul.f32 %v712, 1.442695
  %v776 = vpow.pop %v775
  %v777 = vld [vmem:[%s1] sm:$0xf]
  %v778 = vld [vmem:[%s1 + $0x4] sm:$0xf]
  %v779 = vld [vmem:[%s1 + $0x8] sm:$0xf]
  %v780 = vld [vmem:[%s1 + $0xc] sm:$0xf]
  %v781 = vld [vmem:[%s1 + $0x10] sm:$0xf]
  %v782 = vld [vmem:[%s1 + $0x14] sm:$0xf]
  %v783 = vld [vmem:[%s1 + $0x18] sm:$0xf]
  %v784 = vld [vmem:[%s1 + $0x1c] sm:$0xf]
  %v785 = vld [vmem:[%s1 + $0x20] sm:$0xf]
  %v786 = vld [vmem:[%s1 + $0x24] sm:$0xf]
  %v787 = vld [vmem:[%s1 + $0x28] sm:$0xf]
  %v788 = vld [vmem:[%s1 + $0x2c] sm:$0xf]
  %v789 = vld [vmem:[%s1 + $0x30] sm:$0xf]
  %v790 = vld [vmem:[%s1 + $0x34] sm:$0xf]
  %v791 = vld [vmem:[%s1 + $0x38] sm:$0xf]
  %v792 = vld [vmem:[%s1 + $0x3c] sm:$0xf]
  %v793 = vld [vmem:[%s1 + $0x40] sm:$0xf]
  %v794 = vld [vmem:[%s1 + $0x44] sm:$0xf]
  %v795 = vld [vmem:[%s1 + $0x48] sm:$0xf]
  %v796 = vld [vmem:[%s1 + $0x4c] sm:$0xf]
  %v797 = vld [vmem:[%s1 + $0x50] sm:$0xf]
  %v798 = vld [vmem:[%s1 + $0x54] sm:$0xf]
  %v799 = vld [vmem:[%s1 + $0x58] sm:$0xf]
  %v800 = vld [vmem:[%s1 + $0x5c] sm:$0xf]
  %v801 = vld [vmem:[%s1 + $0x60] sm:$0xf]
  %v802 = vld [vmem:[%s1 + $0x64] sm:$0xf]
  %v803 = vld [vmem:[%s1 + $0x68] sm:$0xf]
  %v804 = vld [vmem:[%s1 + $0x6c] sm:$0xf]
  %v805 = vld [vmem:[%s1 + $0x70] sm:$0xf]
  %v806 = vld [vmem:[%s1 + $0x74] sm:$0xf]
  %v807 = vld [vmem:[%s1 + $0x78] sm:$0xf]
  %v808 = vld [vmem:[%s1 + $0x7c] sm:$0xf]
  %v809 = vunpack.c.l.bf16 %v777
  %v810 = vunpack.c.l.bf16 %v778
  %v811 = vunpack.c.l.bf16 %v779
  %v812 = vunpack.c.l.bf16 %v780
  %v813 = vunpack.c.l.bf16 %v781
  %v814 = vunpack.c.l.bf16 %v782
  %v815 = vunpack.c.l.bf16 %v783
  %v816 = vunpack.c.l.bf16 %v784
  %v817 = vunpack.c.l.bf16 %v785
  %v818 = vunpack.c.l.bf16 %v786
  %v819 = vunpack.c.l.bf16 %v787
  %v820 = vunpack.c.l.bf16 %v788
  %v821 = vunpack.c.l.bf16 %v789
  %v822 = vunpack.c.l.bf16 %v790
  %v823 = vunpack.c.l.bf16 %v791
  %v824 = vunpack.c.l.bf16 %v792
  %v825 = vunpack.c.l.bf16 %v793
  %v826 = vunpack.c.l.bf16 %v794
  %v827 = vunpack.c.l.bf16 %v795
  %v828 = vunpack.c.l.bf16 %v796
  %v829 = vunpack.c.l.bf16 %v797
  %v830 = vunpack.c.l.bf16 %v798
  %v831 = vunpack.c.l.bf16 %v799
  %v832 = vunpack.c.l.bf16 %v800
  %v833 = vunpack.c.l.bf16 %v801
  %v834 = vunpack.c.l.bf16 %v802
  %v835 = vunpack.c.l.bf16 %v803
  %v836 = vunpack.c.l.bf16 %v804
  %v837 = vunpack.c.l.bf16 %v805
  %v838 = vunpack.c.l.bf16 %v806
  %v839 = vunpack.c.l.bf16 %v807
  %v840 = vunpack.c.l.bf16 %v808
  %873 = vrot.lane.b32.xlu0 %v714, 98
  %v874 = vpop.permute.xlu0 %873
  %875 = vrot.lane.b32.xlu0 %v716, 98
  %v876 = vpop.permute.xlu0 %875
  %877 = vrot.lane.b32.xlu0 %v718, 98
  %v878 = vpop.permute.xlu0 %877
  %879 = vrot.lane.b32.xlu0 %v720, 98
  %v880 = vpop.permute.xlu0 %879
  %881 = vrot.lane.b32.xlu0 %v722, 98
  %v882 = vpop.permute.xlu0 %881
  %883 = vrot.lane.b32.xlu0 %v724, 98
  %v884 = vpop.permute.xlu0 %883
  %885 = vrot.lane.b32.xlu0 %v726, 98
  %v886 = vpop.permute.xlu0 %885
  %887 = vrot.lane.b32.xlu0 %v728, 98
  %v888 = vpop.permute.xlu0 %887
  %889 = vrot.lane.b32.xlu0 %v730, 98
  %v890 = vpop.permute.xlu0 %889
  %891 = vrot.lane.b32.xlu0 %v732, 98
  %v892 = vpop.permute.xlu0 %891
  %893 = vrot.lane.b32.xlu0 %v734, 98
  %v894 = vpop.permute.xlu0 %893
  %895 = vrot.lane.b32.xlu0 %v736, 98
  %v896 = vpop.permute.xlu0 %895
  %897 = vrot.lane.b32.xlu0 %v738, 98
  %v898 = vpop.permute.xlu0 %897
  %899 = vrot.lane.b32.xlu0 %v740, 98
  %v900 = vpop.permute.xlu0 %899
  %901 = vrot.lane.b32.xlu0 %v742, 98
  %v902 = vpop.permute.xlu0 %901
  %903 = vrot.lane.b32.xlu0 %v744, 98
  %v904 = vpop.permute.xlu0 %903
  %905 = vrot.lane.b32.xlu0 %v746, 98
  %v906 = vpop.permute.xlu0 %905
  %907 = vrot.lane.b32.xlu0 %v748, 98
  %v908 = vpop.permute.xlu0 %907
  %909 = vrot.lane.b32.xlu0 %v750, 98
  %v910 = vpop.permute.xlu0 %909
  %911 = vrot.lane.b32.xlu0 %v752, 98
  %v912 = vpop.permute.xlu0 %911
  %913 = vrot.lane.b32.xlu0 %v754, 98
  %v914 = vpop.permute.xlu0 %913
  %915 = vrot.lane.b32.xlu0 %v756, 98
  %v916 = vpop.permute.xlu0 %915
  %917 = vrot.lane.b32.xlu0 %v758, 98
  %v918 = vpop.permute.xlu0 %917
  %919 = vrot.lane.b32.xlu0 %v760, 98
  %v920 = vpop.permute.xlu0 %919
  %921 = vrot.lane.b32.xlu0 %v762, 98
  %v922 = vpop.permute.xlu0 %921
  %923 = vrot.lane.b32.xlu0 %v764, 98
  %v924 = vpop.permute.xlu0 %923
  %925 = vrot.lane.b32.xlu0 %v766, 98
  %v926 = vpop.permute.xlu0 %925
  %927 = vrot.lane.b32.xlu0 %v768, 98
  %v928 = vpop.permute.xlu0 %927
  %929 = vrot.lane.b32.xlu0 %v770, 98
  %v930 = vpop.permute.xlu0 %929
  %931 = vrot.lane.b32.xlu0 %v772, 98
  %v932 = vpop.permute.xlu0 %931
  %933 = vrot.lane.b32.xlu0 %v774, 98
  %v934 = vpop.permute.xlu0 %933
  %935 = vrot.lane.b32.xlu0 %v776, 98
  %v936 = vpop.permute.xlu0 %935
  %v969 = vmul.f32 %v809, %v874
  %v970 = vmul.f32 %v810, %v876
  %v971 = vmul.f32 %v811, %v878
  %v972 = vmul.f32 %v812, %v880
  %v973 = vmul.f32 %v813, %v882
  %v974 = vmul.f32 %v814, %v884
  %v975 = vmul.f32 %v815, %v886
  %v976 = vmul.f32 %v816, %v888
  %v977 = vmul.f32 %v817, %v890
  %v978 = vmul.f32 %v818, %v892
  %v979 = vmul.f32 %v819, %v894
  %v980 = vmul.f32 %v820, %v896
  %v981 = vmul.f32 %v821, %v898
  %v982 = vmul.f32 %v822, %v900
  %v983 = vmul.f32 %v823, %v902
  %v984 = vmul.f32 %v824, %v904
  %v985 = vmul.f32 %v825, %v906
  %v986 = vmul.f32 %v826, %v908
  %v987 = vmul.f32 %v827, %v910
  %v988 = vmul.f32 %v828, %v912
  %v989 = vmul.f32 %v829, %v914
  %v990 = vmul.f32 %v830, %v916
  %v991 = vmul.f32 %v831, %v918
  %v992 = vmul.f32 %v832, %v920
  %v993 = vmul.f32 %v833, %v922
  %v994 = vmul.f32 %v834, %v924
  %v995 = vmul.f32 %v835, %v926
  %v996 = vmul.f32 %v836, %v928
  %v997 = vmul.f32 %v837, %v930
  %v998 = vmul.f32 %v838, %v932
  %v999 = vmul.f32 %v839, %v934
  %v1000 = vmul.f32 %v840, %v936
  %v1001 = vadd.f32 %v555, %v969
  %v1002 = vadd.f32 %v558, %v970
  %v1003 = vadd.f32 %v563, %v971
  %v1004 = vadd.f32 %v566, %v972
  %v1005 = vadd.f32 %v571, %v973
  %v1006 = vadd.f32 %v574, %v974
  %v1007 = vadd.f32 %v579, %v975
  %v1008 = vadd.f32 %v582, %v976
  %v1009 = vadd.f32 %v587, %v977
  %v1010 = vadd.f32 %v590, %v978
  %v1011 = vadd.f32 %v595, %v979
  %v1012 = vadd.f32 %v598, %v980
  %v1013 = vadd.f32 %v603, %v981
  %v1014 = vadd.f32 %v606, %v982
  %v1015 = vadd.f32 %v611, %v983
  %v1016 = vadd.f32 %v614, %v984
  %v1017 = vadd.f32 %v619, %v985
  %v1018 = vadd.f32 %v622, %v986
  %v1019 = vadd.f32 %v627, %v987
  %v1020 = vadd.f32 %v630, %v988
  %v1021 = vadd.f32 %v635, %v989
  %v1022 = vadd.f32 %v638, %v990
  %v1023 = vadd.f32 %v643, %v991
  %v1024 = vadd.f32 %v646, %v992
  %v1025 = vadd.f32 %v651, %v993
  %v1026 = vadd.f32 %v654, %v994
  %v1027 = vadd.f32 %v659, %v995
  %v1028 = vadd.f32 %v662, %v996
  %v1029 = vadd.f32 %v667, %v997
  %v1030 = vadd.f32 %v670, %v998
  %v1031 = vadd.f32 %v675, %v999
  %v1032 = vadd.f32 %v678, %v1000
  %v1033 = vpack.c.bf16 %v1002, %v1001
  %v1034 = vpack.c.bf16 %v1004, %v1003
  %v1035 = vpack.c.bf16 %v1006, %v1005
  %v1036 = vpack.c.bf16 %v1008, %v1007
  %v1037 = vpack.c.bf16 %v1010, %v1009
  %v1038 = vpack.c.bf16 %v1012, %v1011
  %v1039 = vpack.c.bf16 %v1014, %v1013
  %v1040 = vpack.c.bf16 %v1016, %v1015
  %v1041 = vpack.c.bf16 %v1018, %v1017
  %v1042 = vpack.c.bf16 %v1020, %v1019
  %v1043 = vpack.c.bf16 %v1022, %v1021
  %v1044 = vpack.c.bf16 %v1024, %v1023
  %v1045 = vpack.c.bf16 %v1026, %v1025
  %v1046 = vpack.c.bf16 %v1028, %v1027
  %v1047 = vpack.c.bf16 %v1030, %v1029
  %v1048 = vpack.c.bf16 %v1032, %v1031
  %v1049 = vld [vmem:[%s6] sm:$0xf]
  %v1050 = vld [vmem:[%s6 + $0x4] sm:$0xf]
  %v1051 = vld [vmem:[%s6 + $0x8] sm:$0xf]
  %v1052 = vld [vmem:[%s6 + $0xc] sm:$0x7]
  %v1053 = vld [vmem:[%s7] sm:$0x1]
  %v1055 = vlaneseq
  %v1056 = vshrl.u32 %v1055, 7
  %v1057 = vsub.s32 0, %v1056
  %v1058 = vrot.slane %v1053, %v1057
  %v1064 = vunpack.c.l.b16 %v1049
  %v1065 = vunpack.c.l.b16 %v1050
  %v1066 = vunpack.c.l.b16 %v1051
  %v1067 = vunpack.c.l.b16 %v1052
  %v1068 = vpack.c.b16 %v1065, %v1064
  %v1069 = vpack.c.b16 %v1067, %v1066
  %vm1071 = vcmask 244736
  %v1073 = vsel %vm1071, %v1033, 0
  %v1076 = vsel %vm1071, %v1034, 0
  %v1079 = vsel %vm1071, %v1035, 0
  %v1082 = vsel %vm1071, %v1036, 0
  %v1085 = vsel %vm1071, %v1037, 0
  %v1088 = vsel %vm1071, %v1038, 0
  %v1091 = vsel %vm1071, %v1039, 0
  %v1094 = vsel %vm1071, %v1040, 0
  %v1097 = vsel %vm1071, %v1041, 0
  %v1100 = vsel %vm1071, %v1042, 0
  %v1103 = vsel %vm1071, %v1043, 0
  %v1106 = vsel %vm1071, %v1044, 0
  %v1109 = vsel %vm1071, %v1045, 0
  %v1112 = vsel %vm1071, %v1046, 0
  %v1115 = vsel %vm1071, %v1047, 0
  %v1118 = vsel %vm1071, %v1048, 0
  %vm1120 = vcmask 1046528
  %v1122 = vsel %vm1120, %v1069, 0
  %1124 = vmatprep.subr.bf16.mxu0 0
  %1125 = vmatpush1.bf16.msra.mxu0 0
  %1126 = vmatprep.subr.bf16.mxu0 0
  %1127 = vmatpush1.bf16.msra.mxu0 0
  %1128 = vmatprep.subr.bf16.mxu0 0
  %1129 = vmatpush1.bf16.msra.mxu0 0
  %1130 = vmatprep.subr.bf16.mxu0 0
  %1131 = vmatpush1.bf16.msra.mxu0 0
  %1132 = vmatprep.subr.bf16.mxu0 0
  %1133 = vmatpush1.bf16.msra.mxu0 0
  %1134 = vmatprep.subr.bf16.mxu0 0
  %1135 = vmatpush1.bf16.msra.mxu0 0
  %1136 = vmatprep.subr.bf16.mxu0 0
  %1137 = vmatpush1.bf16.msra.mxu0 %v1122
  %1138 = vmatprep.subr.bf16.mxu0 0
  %1139 = vmatpush1.bf16.msra.mxu0 %v1068
  %1140 = vmatprep.subr.bf16.mxu0 0
  %1141 = vmatpush2.bf16.msra.mxu0 0
  %1142 = vmatprep.subr.bf16.mxu0 0
  %1143 = vmatpush2.bf16.msra.mxu0 0
  %1144 = vmatprep.subr.bf16.mxu0 0
  %1145 = vmatpush2.bf16.msra.mxu0 0
  %1146 = vmatprep.subr.bf16.mxu0 0
  %1147 = vmatpush2.bf16.msra.mxu0 0
  %1148 = vmatprep.subr.bf16.mxu0 0
  %1149 = vmatpush2.bf16.msra.mxu0 0
  %1150 = vmatprep.subr.bf16.mxu0 0
  %1151 = vmatpush2.bf16.msra.mxu0 0
  %1152 = vmatprep.subr.bf16.mxu0 0
  %1153 = vmatpush2.bf16.msra.mxu0 0
  %1154 = vmatprep.subr.bf16.mxu0 0
  %1155 = vmatpush2.bf16.msra.mxu0 0
  %1156 = vmatprep.mubr.bf16.mxu0 0
  %1157 = vmatmul.mubr.bf16.gmra.mxu0 %v1073
  %v1158 = vpop.f32.mrf.mxu0
  %v1159 = vadd.f32 %v1058, %v1158
  %v1160 = vpop.f32.mrf.mxu0
  %v1161 = vpop.f32.mrf.mxu0
  %v1162 = vadd.f32 %v1058, %v1161
  %v1163 = vpop.f32.mrf.mxu0
  %1164 = vmatprep.mubr.bf16.mxu0 0
  %1165 = vmatmul.mubr.bf16.gmra.mxu0 %v1076
  %v1166 = vpop.f32.mrf.mxu0
  %v1167 = vadd.f32 %v1058, %v1166
  %v1168 = vpop.f32.mrf.mxu0
  %v1169 = vpop.f32.mrf.mxu0
  %v1170 = vadd.f32 %v1058, %v1169
  %v1171 = vpop.f32.mrf.mxu0
  %1172 = vmatprep.mubr.bf16.mxu0 0
  %1173 = vmatmul.mubr.bf16.gmra.mxu0 %v1079
  %v1174 = vpop.f32.mrf.mxu0
  %v1175 = vadd.f32 %v1058, %v1174
  %v1176 = vpop.f32.mrf.mxu0
  %v1177 = vpop.f32.mrf.mxu0
  %v1178 = vadd.f32 %v1058, %v1177
  %v1179 = vpop.f32.mrf.mxu0
  %1180 = vmatprep.mubr.bf16.mxu0 0
  %1181 = vmatmul.mubr.bf16.gmra.mxu0 %v1082
  %v1182 = vpop.f32.mrf.mxu0
  %v1183 = vadd.f32 %v1058, %v1182
  %v1184 = vpop.f32.mrf.mxu0
  %v1185 = vpop.f32.mrf.mxu0
  %v1186 = vadd.f32 %v1058, %v1185
  %v1187 = vpop.f32.mrf.mxu0
  %1188 = vmatprep.mubr.bf16.mxu0 0
  %1189 = vmatmul.mubr.bf16.gmra.mxu0 %v1085
  %v1190 = vpop.f32.mrf.mxu0
  %v1191 = vadd.f32 %v1058, %v1190
  %v1192 = vpop.f32.mrf.mxu0
  %v1193 = vpop.f32.mrf.mxu0
  %v1194 = vadd.f32 %v1058, %v1193
  %v1195 = vpop.f32.mrf.mxu0
  %1196 = vmatprep.mubr.bf16.mxu0 0
  %1197 = vmatmul.mubr.bf16.gmra.mxu0 %v1088
  %v1198 = vpop.f32.mrf.mxu0
  %v1199 = vadd.f32 %v1058, %v1198
  %v1200 = vpop.f32.mrf.mxu0
  %v1201 = vpop.f32.mrf.mxu0
  %v1202 = vadd.f32 %v1058, %v1201
  %v1203 = vpop.f32.mrf.mxu0
  %1204 = vmatprep.mubr.bf16.mxu0 0
  %1205 = vmatmul.mubr.bf16.gmra.mxu0 %v1091
  %v1206 = vpop.f32.mrf.mxu0
  %v1207 = vadd.f32 %v1058, %v1206
  %v1208 = vpop.f32.mrf.mxu0
  %v1209 = vpop.f32.mrf.mxu0
  %v1210 = vadd.f32 %v1058, %v1209
  %v1211 = vpop.f32.mrf.mxu0
  %1212 = vmatprep.mubr.bf16.mxu0 0
  %1213 = vmatmul.mubr.bf16.gmra.mxu0 %v1094
  %v1214 = vpop.f32.mrf.mxu0
  %v1215 = vadd.f32 %v1058, %v1214
  %v1216 = vpop.f32.mrf.mxu0
  %v1217 = vpop.f32.mrf.mxu0
  %v1218 = vadd.f32 %v1058, %v1217
  %v1219 = vpop.f32.mrf.mxu0
  %1220 = vmatprep.mubr.bf16.mxu0 0
  %1221 = vmatmul.mubr.bf16.gmra.mxu0 %v1097
  %v1222 = vpop.f32.mrf.mxu0
  %v1223 = vadd.f32 %v1058, %v1222
  %v1224 = vpop.f32.mrf.mxu0
  %v1225 = vpop.f32.mrf.mxu0
  %v1226 = vadd.f32 %v1058, %v1225
  %v1227 = vpop.f32.mrf.mxu0
  %1228 = vmatprep.mubr.bf16.mxu0 0
  %1229 = vmatmul.mubr.bf16.gmra.mxu0 %v1100
  %v1230 = vpop.f32.mrf.mxu0
  %v1231 = vadd.f32 %v1058, %v1230
  %v1232 = vpop.f32.mrf.mxu0
  %v1233 = vpop.f32.mrf.mxu0
  %v1234 = vadd.f32 %v1058, %v1233
  %v1235 = vpop.f32.mrf.mxu0
  %1236 = vmatprep.mubr.bf16.mxu0 0
  %1237 = vmatmul.mubr.bf16.gmra.mxu0 %v1103
  %v1238 = vpop.f32.mrf.mxu0
  %v1239 = vadd.f32 %v1058, %v1238
  %v1240 = vpop.f32.mrf.mxu0
  %v1241 = vpop.f32.mrf.mxu0
  %v1242 = vadd.f32 %v1058, %v1241
  %v1243 = vpop.f32.mrf.mxu0
  %1244 = vmatprep.mubr.bf16.mxu0 0
  %1245 = vmatmul.mubr.bf16.gmra.mxu0 %v1106
  %v1246 = vpop.f32.mrf.mxu0
  %v1247 = vadd.f32 %v1058, %v1246
  %v1248 = vpop.f32.mrf.mxu0
  %v1249 = vpop.f32.mrf.mxu0
  %v1250 = vadd.f32 %v1058, %v1249
  %v1251 = vpop.f32.mrf.mxu0
  %1252 = vmatprep.mubr.bf16.mxu0 0
  %1253 = vmatmul.mubr.bf16.gmra.mxu0 %v1109
  %v1254 = vpop.f32.mrf.mxu0
  %v1255 = vadd.f32 %v1058, %v1254
  %v1256 = vpop.f32.mrf.mxu0
  %v1257 = vpop.f32.mrf.mxu0
  %v1258 = vadd.f32 %v1058, %v1257
  %v1259 = vpop.f32.mrf.mxu0
  %1260 = vmatprep.mubr.bf16.mxu0 0
  %1261 = vmatmul.mubr.bf16.gmra.mxu0 %v1112
  %v1262 = vpop.f32.mrf.mxu0
  %v1263 = vadd.f32 %v1058, %v1262
  %v1264 = vpop.f32.mrf.mxu0
  %v1265 = vpop.f32.mrf.mxu0
  %v1266 = vadd.f32 %v1058, %v1265
  %v1267 = vpop.f32.mrf.mxu0
  %1268 = vmatprep.mubr.bf16.mxu0 0
  %1269 = vmatmul.mubr.bf16.gmra.mxu0 %v1115
  %v1270 = vpop.f32.mrf.mxu0
  %v1271 = vadd.f32 %v1058, %v1270
  %v1272 = vpop.f32.mrf.mxu0
  %v1273 = vpop.f32.mrf.mxu0
  %v1274 = vadd.f32 %v1058, %v1273
  %v1275 = vpop.f32.mrf.mxu0
  %1276 = vmatprep.mubr.bf16.mxu0 0
  %1277 = vmatmul.mubr.bf16.gmra.mxu0 %v1118
  %v1278 = vpop.f32.mrf.mxu0
  %v1279 = vadd.f32 %v1058, %v1278
  %v1280 = vpop.f32.mrf.mxu0
  %v1281 = vpop.f32.mrf.mxu0
  %v1282 = vadd.f32 %v1058, %v1281
  %v1283 = vpop.f32.mrf.mxu0
  %1284 = vdwg.mxu0
  %v1285 = vmax.f32 %v1159, 0.0
  %v1286 = vmax.f32 %v1162, 0.0
  %v1287 = vmax.f32 %v1167, 0.0
  %v1288 = vmax.f32 %v1170, 0.0
  %v1289 = vmax.f32 %v1175, 0.0
  %v1290 = vmax.f32 %v1178, 0.0
  %v1291 = vmax.f32 %v1183, 0.0
  %v1292 = vmax.f32 %v1186, 0.0
  %v1293 = vmax.f32 %v1191, 0.0
  %v1294 = vmax.f32 %v1194, 0.0
  %v1295 = vmax.f32 %v1199, 0.0
  %v1296 = vmax.f32 %v1202, 0.0
  %v1297 = vmax.f32 %v1207, 0.0
  %v1298 = vmax.f32 %v1210, 0.0
  %v1299 = vmax.f32 %v1215, 0.0
  %v1300 = vmax.f32 %v1218, 0.0
  %v1301 = vmax.f32 %v1223, 0.0
  %v1302 = vmax.f32 %v1226, 0.0
  %v1303 = vmax.f32 %v1231, 0.0
  %v1304 = vmax.f32 %v1234, 0.0
  %v1305 = vmax.f32 %v1239, 0.0
  %v1306 = vmax.f32 %v1242, 0.0
  %v1307 = vmax.f32 %v1247, 0.0
  %v1308 = vmax.f32 %v1250, 0.0
  %v1309 = vmax.f32 %v1255, 0.0
  %v1310 = vmax.f32 %v1258, 0.0
  %v1311 = vmax.f32 %v1263, 0.0
  %v1312 = vmax.f32 %v1266, 0.0
  %v1313 = vmax.f32 %v1271, 0.0
  %v1314 = vmax.f32 %v1274, 0.0
  %v1315 = vmax.f32 %v1279, 0.0
  %v1316 = vmax.f32 %v1282, 0.0
  %v1317 = vpack.c.bf16 %v1286, %v1285
  %v1318 = vpack.c.bf16 %v1288, %v1287
  %v1319 = vpack.c.bf16 %v1290, %v1289
  %v1320 = vpack.c.bf16 %v1292, %v1291
  %v1321 = vpack.c.bf16 %v1294, %v1293
  %v1322 = vpack.c.bf16 %v1296, %v1295
  %v1323 = vpack.c.bf16 %v1298, %v1297
  %v1324 = vpack.c.bf16 %v1300, %v1299
  %v1325 = vpack.c.bf16 %v1302, %v1301
  %v1326 = vpack.c.bf16 %v1304, %v1303
  %v1327 = vpack.c.bf16 %v1306, %v1305
  %v1328 = vpack.c.bf16 %v1308, %v1307
  %v1329 = vpack.c.bf16 %v1310, %v1309
  %v1330 = vpack.c.bf16 %v1312, %v1311
  %v1331 = vpack.c.bf16 %v1314, %v1313
  %v1332 = vpack.c.bf16 %v1316, %v1315
  %v1333 = vld [vmem:[%s8] sm:$0xf]
  %v1334 = vld [vmem:[%s8 + $0x4] sm:$0xf]
  %v1335 = vld [vmem:[%s8 + $0x8] sm:$0xf]
  %v1336 = vld [vmem:[%s8 + $0xc] sm:$0xf]
  %v1337 = vld [vmem:[%s8 + $0x10] sm:$0xf]
  %v1338 = vld [vmem:[%s8 + $0x14] sm:$0xf]
  %v1339 = vld [vmem:[%s8 + $0x18] sm:$0xf]
  %v1340 = vld [vmem:[%s8 + $0x1c] sm:$0x3]
  %v1341 = vld [vmem:[%s9] sm:$0x1]
  %v1343 = vlaneseq
  %v1344 = vshrl.u32 %v1343, 7
  %v1345 = vsub.s32 0, %v1344
  %v1346 = vrot.slane %v1341, %v1345
  %v1356 = vunpack.c.l.b16 %v1333
  %v1357 = vunpack.c.l.b16 %v1334
  %v1358 = vunpack.c.l.b16 %v1335
  %v1359 = vunpack.c.l.b16 %v1336
  %v1360 = vunpack.c.l.b16 %v1337
  %v1361 = vunpack.c.l.b16 %v1338
  %v1362 = vunpack.c.l.b16 %v1339
  %v1363 = vunpack.c.l.b16 %v1340
  %v1364 = vpack.c.b16 %v1357, %v1356
  %v1365 = vpack.c.b16 %v1359, %v1358
  %v1366 = vpack.c.b16 %v1361, %v1360
  %v1367 = vpack.c.b16 %v1363, %v1362
  %v1372 = vsel %vm467, %v1317, 0
  %v1375 = vsel %vm467, %v1318, 0
  %v1378 = vsel %vm467, %v1319, 0
  %v1381 = vsel %vm467, %v1320, 0
  %v1384 = vsel %vm467, %v1321, 0
  %v1387 = vsel %vm467, %v1322, 0
  %v1390 = vsel %vm467, %v1323, 0
  %v1393 = vsel %vm467, %v1324, 0
  %v1396 = vsel %vm467, %v1325, 0
  %v1399 = vsel %vm467, %v1326, 0
  %v1402 = vsel %vm467, %v1327, 0
  %v1405 = vsel %vm467, %v1328, 0
  %v1408 = vsel %vm467, %v1329, 0
  %v1411 = vsel %vm467, %v1330, 0
  %v1414 = vsel %vm467, %v1331, 0
  %v1417 = vsel %vm467, %v1332, 0
  %v1420 = vsel %vm516, %v1367, 0
  %1422 = vmatprep.subr.bf16.mxu0 0
  %1423 = vmatpush1.bf16.msra.mxu0 0
  %1424 = vmatprep.subr.bf16.mxu0 0
  %1425 = vmatpush1.bf16.msra.mxu0 0
  %1426 = vmatprep.subr.bf16.mxu0 0
  %1427 = vmatpush1.bf16.msra.mxu0 0
  %1428 = vmatprep.subr.bf16.mxu0 0
  %1429 = vmatpush1.bf16.msra.mxu0 0
  %1430 = vmatprep.subr.bf16.mxu0 0
  %1431 = vmatpush1.bf16.msra.mxu0 %v1420
  %1432 = vmatprep.subr.bf16.mxu0 0
  %1433 = vmatpush1.bf16.msra.mxu0 %v1366
  %1434 = vmatprep.subr.bf16.mxu0 0
  %1435 = vmatpush1.bf16.msra.mxu0 %v1365
  %1436 = vmatprep.subr.bf16.mxu0 0
  %1437 = vmatpush1.bf16.msra.mxu0 %v1364
  %1438 = vmatprep.subr.bf16.mxu0 0
  %1439 = vmatpush2.bf16.msra.mxu0 0
  %1440 = vmatprep.subr.bf16.mxu0 0
  %1441 = vmatpush2.bf16.msra.mxu0 0
  %1442 = vmatprep.subr.bf16.mxu0 0
  %1443 = vmatpush2.bf16.msra.mxu0 0
  %1444 = vmatprep.subr.bf16.mxu0 0
  %1445 = vmatpush2.bf16.msra.mxu0 0
  %1446 = vmatprep.subr.bf16.mxu0 0
  %1447 = vmatpush2.bf16.msra.mxu0 0
  %1448 = vmatprep.subr.bf16.mxu0 0
  %1449 = vmatpush2.bf16.msra.mxu0 0
  %1450 = vmatprep.subr.bf16.mxu0 0
  %1451 = vmatpush2.bf16.msra.mxu0 0
  %1452 = vmatprep.subr.bf16.mxu0 0
  %1453 = vmatpush2.bf16.msra.mxu0 0
  %1454 = vmatprep.mubr.bf16.mxu0 0
  %1455 = vmatmul.mubr.bf16.gmra.mxu0 %v1372
  %v1456 = vpop.f32.mrf.mxu0
  %v1457 = vadd.f32 %v1346, %v1456
  %v1458 = vpop.f32.mrf.mxu0
  %v1459 = vpop.f32.mrf.mxu0
  %v1460 = vadd.f32 %v1346, %v1459
  %v1461 = vpop.f32.mrf.mxu0
  %1462 = vmatprep.mubr.bf16.mxu0 0
  %1463 = vmatmul.mubr.bf16.gmra.mxu0 %v1375
  %v1464 = vpop.f32.mrf.mxu0
  %v1465 = vadd.f32 %v1346, %v1464
  %v1466 = vpop.f32.mrf.mxu0
  %v1467 = vpop.f32.mrf.mxu0
  %v1468 = vadd.f32 %v1346, %v1467
  %v1469 = vpop.f32.mrf.mxu0
  %1470 = vmatprep.mubr.bf16.mxu0 0
  %1471 = vmatmul.mubr.bf16.gmra.mxu0 %v1378
  %v1472 = vpop.f32.mrf.mxu0
  %v1473 = vadd.f32 %v1346, %v1472
  %v1474 = vpop.f32.mrf.mxu0
  %v1475 = vpop.f32.mrf.mxu0
  %v1476 = vadd.f32 %v1346, %v1475
  %v1477 = vpop.f32.mrf.mxu0
  %1478 = vmatprep.mubr.bf16.mxu0 0
  %1479 = vmatmul.mubr.bf16.gmra.mxu0 %v1381
  %v1480 = vpop.f32.mrf.mxu0
  %v1481 = vadd.f32 %v1346, %v1480
  %v1482 = vpop.f32.mrf.mxu0
  %v1483 = vpop.f32.mrf.mxu0
  %v1484 = vadd.f32 %v1346, %v1483
  %v1485 = vpop.f32.mrf.mxu0
  %1486 = vmatprep.mubr.bf16.mxu0 0
  %1487 = vmatmul.mubr.bf16.gmra.mxu0 %v1384
  %v1488 = vpop.f32.mrf.mxu0
  %v1489 = vadd.f32 %v1346, %v1488
  %v1490 = vpop.f32.mrf.mxu0
  %v1491 = vpop.f32.mrf.mxu0
  %v1492 = vadd.f32 %v1346, %v1491
  %v1493 = vpop.f32.mrf.mxu0
  %1494 = vmatprep.mubr.bf16.mxu0 0
  %1495 = vmatmul.mubr.bf16.gmra.mxu0 %v1387
  %v1496 = vpop.f32.mrf.mxu0
  %v1497 = vadd.f32 %v1346, %v1496
  %v1498 = vpop.f32.mrf.mxu0
  %v1499 = vpop.f32.mrf.mxu0
  %v1500 = vadd.f32 %v1346, %v1499
  %v1501 = vpop.f32.mrf.mxu0
  %1502 = vmatprep.mubr.bf16.mxu0 0
  %1503 = vmatmul.mubr.bf16.gmra.mxu0 %v1390
  %v1504 = vpop.f32.mrf.mxu0
  %v1505 = vadd.f32 %v1346, %v1504
  %v1506 = vpop.f32.mrf.mxu0
  %v1507 = vpop.f32.mrf.mxu0
  %v1508 = vadd.f32 %v1346, %v1507
  %v1509 = vpop.f32.mrf.mxu0
  %1510 = vmatprep.mubr.bf16.mxu0 0
  %1511 = vmatmul.mubr.bf16.gmra.mxu0 %v1393
  %v1512 = vpop.f32.mrf.mxu0
  %v1513 = vadd.f32 %v1346, %v1512
  %v1514 = vpop.f32.mrf.mxu0
  %v1515 = vpop.f32.mrf.mxu0
  %v1516 = vadd.f32 %v1346, %v1515
  %v1517 = vpop.f32.mrf.mxu0
  %1518 = vmatprep.mubr.bf16.mxu0 0
  %1519 = vmatmul.mubr.bf16.gmra.mxu0 %v1396
  %v1520 = vpop.f32.mrf.mxu0
  %v1521 = vadd.f32 %v1346, %v1520
  %v1522 = vpop.f32.mrf.mxu0
  %v1523 = vpop.f32.mrf.mxu0
  %v1524 = vadd.f32 %v1346, %v1523
  %v1525 = vpop.f32.mrf.mxu0
  %1526 = vmatprep.mubr.bf16.mxu0 0
  %1527 = vmatmul.mubr.bf16.gmra.mxu0 %v1399
  %v1528 = vpop.f32.mrf.mxu0
  %v1529 = vadd.f32 %v1346, %v1528
  %v1530 = vpop.f32.mrf.mxu0
  %v1531 = vpop.f32.mrf.mxu0
  %v1532 = vadd.f32 %v1346, %v1531
  %v1533 = vpop.f32.mrf.mxu0
  %1534 = vmatprep.mubr.bf16.mxu0 0
  %1535 = vmatmul.mubr.bf16.gmra.mxu0 %v1402
  %v1536 = vpop.f32.mrf.mxu0
  %v1537 = vadd.f32 %v1346, %v1536
  %v1538 = vpop.f32.mrf.mxu0
  %v1539 = vpop.f32.mrf.mxu0
  %v1540 = vadd.f32 %v1346, %v1539
  %v1541 = vpop.f32.mrf.mxu0
  %1542 = vmatprep.mubr.bf16.mxu0 0
  %1543 = vmatmul.mubr.bf16.gmra.mxu0 %v1405
  %v1544 = vpop.f32.mrf.mxu0
  %v1545 = vadd.f32 %v1346, %v1544
  %v1546 = vpop.f32.mrf.mxu0
  %v1547 = vpop.f32.mrf.mxu0
  %v1548 = vadd.f32 %v1346, %v1547
  %v1549 = vpop.f32.mrf.mxu0
  %1550 = vmatprep.mubr.bf16.mxu0 0
  %1551 = vmatmul.mubr.bf16.gmra.mxu0 %v1408
  %v1552 = vpop.f32.mrf.mxu0
  %v1553 = vadd.f32 %v1346, %v1552
  %v1554 = vpop.f32.mrf.mxu0
  %v1555 = vpop.f32.mrf.mxu0
  %v1556 = vadd.f32 %v1346, %v1555
  %v1557 = vpop.f32.mrf.mxu0
  %1558 = vmatprep.mubr.bf16.mxu0 0
  %1559 = vmatmul.mubr.bf16.gmra.mxu0 %v1411
  %v1560 = vpop.f32.mrf.mxu0
  %v1561 = vadd.f32 %v1346, %v1560
  %v1562 = vpop.f32.mrf.mxu0
  %v1563 = vpop.f32.mrf.mxu0
  %v1564 = vadd.f32 %v1346, %v1563
  %v1565 = vpop.f32.mrf.mxu0
  %1566 = vmatprep.mubr.bf16.mxu0 0
  %1567 = vmatmul.mubr.bf16.gmra.mxu0 %v1414
  %v1568 = vpop.f32.mrf.mxu0
  %v1569 = vadd.f32 %v1346, %v1568
  %v1570 = vpop.f32.mrf.mxu0
  %v1571 = vpop.f32.mrf.mxu0
  %v1572 = vadd.f32 %v1346, %v1571
  %v1573 = vpop.f32.mrf.mxu0
  %1574 = vmatprep.mubr.bf16.mxu0 0
  %1575 = vmatmul.mubr.bf16.gmra.mxu0 %v1417
  %v1576 = vpop.f32.mrf.mxu0
  %v1577 = vadd.f32 %v1346, %v1576
  %v1578 = vpop.f32.mrf.mxu0
  %v1579 = vpop.f32.mrf.mxu0
  %v1580 = vadd.f32 %v1346, %v1579
  %v1581 = vpop.f32.mrf.mxu0
  %1582 = vdwg.mxu0
  %v1583 = vmul.f32 %v1457, 0.5
  %v1584 = vmul.f32 %v1460, 0.5
  %v1585 = vmul.f32 %v1465, 0.5
  %v1586 = vmul.f32 %v1468, 0.5
  %v1587 = vmul.f32 %v1473, 0.5
  %v1588 = vmul.f32 %v1476, 0.5
  %v1589 = vmul.f32 %v1481, 0.5
  %v1590 = vmul.f32 %v1484, 0.5
  %v1591 = vmul.f32 %v1489, 0.5
  %v1592 = vmul.f32 %v1492, 0.5
  %v1593 = vmul.f32 %v1497, 0.5
  %v1594 = vmul.f32 %v1500, 0.5
  %v1595 = vmul.f32 %v1505, 0.5
  %v1596 = vmul.f32 %v1508, 0.5
  %v1597 = vmul.f32 %v1513, 0.5
  %v1598 = vmul.f32 %v1516, 0.5
  %v1599 = vmul.f32 %v1521, 0.5
  %v1600 = vmul.f32 %v1524, 0.5
  %v1601 = vmul.f32 %v1529, 0.5
  %v1602 = vmul.f32 %v1532, 0.5
  %v1603 = vmul.f32 %v1537, 0.5
  %v1604 = vmul.f32 %v1540, 0.5
  %v1605 = vmul.f32 %v1545, 0.5
  %v1606 = vmul.f32 %v1548, 0.5
  %v1607 = vmul.f32 %v1553, 0.5
  %v1608 = vmul.f32 %v1556, 0.5
  %v1609 = vmul.f32 %v1561, 0.5
  %v1610 = vmul.f32 %v1564, 0.5
  %v1611 = vmul.f32 %v1569, 0.5
  %v1612 = vmul.f32 %v1572, 0.5
  %v1613 = vmul.f32 %v1577, 0.5
  %v1614 = vmul.f32 %v1580, 0.5
  %v1615 = vtanh.pop %v1583
  %v1616 = vtanh.pop %v1584
  %v1617 = vtanh.pop %v1585
  %v1618 = vtanh.pop %v1586
  %v1619 = vtanh.pop %v1587
  %v1620 = vtanh.pop %v1588
  %v1621 = vtanh.pop %v1589
  %v1622 = vtanh.pop %v1590
  %v1623 = vtanh.pop %v1591
  %v1624 = vtanh.pop %v1592
  %v1625 = vtanh.pop %v1593
  %v1626 = vtanh.pop %v1594
  %v1627 = vtanh.pop %v1595
  %v1628 = vtanh.pop %v1596
  %v1629 = vtanh.pop %v1597
  %v1630 = vtanh.pop %v1598
  %v1631 = vtanh.pop %v1599
  %v1632 = vtanh.pop %v1600
  %v1633 = vtanh.pop %v1601
  %v1634 = vtanh.pop %v1602
  %v1635 = vtanh.pop %v1603
  %v1636 = vtanh.pop %v1604
  %v1637 = vtanh.pop %v1605
  %v1638 = vtanh.pop %v1606
  %v1639 = vtanh.pop %v1607
  %v1640 = vtanh.pop %v1608
  %v1641 = vtanh.pop %v1609
  %v1642 = vtanh.pop %v1610
  %v1643 = vtanh.pop %v1611
  %v1644 = vtanh.pop %v1612
  %v1645 = vtanh.pop %v1613
  %v1646 = vtanh.pop %v1614
  %v1647 = vadd.f32 %v1615, 1.0
  %v1648 = vadd.f32 %v1616, 1.0
  %v1649 = vadd.f32 %v1617, 1.0
  %v1650 = vadd.f32 %v1618, 1.0
  %v1651 = vadd.f32 %v1619, 1.0
  %v1652 = vadd.f32 %v1620, 1.0
  %v1653 = vadd.f32 %v1621, 1.0
  %v1654 = vadd.f32 %v1622, 1.0
  %v1655 = vadd.f32 %v1623, 1.0
  %v1656 = vadd.f32 %v1624, 1.0
  %v1657 = vadd.f32 %v1625, 1.0
  %v1658 = vadd.f32 %v1626, 1.0
  %v1659 = vadd.f32 %v1627, 1.0
  %v1660 = vadd.f32 %v1628, 1.0
  %v1661 = vadd.f32 %v1629, 1.0
  %v1662 = vadd.f32 %v1630, 1.0
  %v1663 = vadd.f32 %v1631, 1.0
  %v1664 = vadd.f32 %v1632, 1.0
  %v1665 = vadd.f32 %v1633, 1.0
  %v1666 = vadd.f32 %v1634, 1.0
  %v1667 = vadd.f32 %v1635, 1.0
  %v1668 = vadd.f32 %v1636, 1.0
  %v1669 = vadd.f32 %v1637, 1.0
  %v1670 = vadd.f32 %v1638, 1.0
  %v1671 = vadd.f32 %v1639, 1.0
  %v1672 = vadd.f32 %v1640, 1.0
  %v1673 = vadd.f32 %v1641, 1.0
  %v1674 = vadd.f32 %v1642, 1.0
  %v1675 = vadd.f32 %v1643, 1.0
  %v1676 = vadd.f32 %v1644, 1.0
  %v1677 = vadd.f32 %v1645, 1.0
  %v1678 = vadd.f32 %v1646, 1.0
  %v1679 = vmul.f32 %v1647, 0.5
  %v1680 = vmul.f32 %v1648, 0.5
  %v1681 = vmul.f32 %v1649, 0.5
  %v1682 = vmul.f32 %v1650, 0.5
  %v1683 = vmul.f32 %v1651, 0.5
  %v1684 = vmul.f32 %v1652, 0.5
  %v1685 = vmul.f32 %v1653, 0.5
  %v1686 = vmul.f32 %v1654, 0.5
  %v1687 = vmul.f32 %v1655, 0.5
  %v1688 = vmul.f32 %v1656, 0.5
  %v1689 = vmul.f32 %v1657, 0.5
  %v1690 = vmul.f32 %v1658, 0.5
  %v1691 = vmul.f32 %v1659, 0.5
  %v1692 = vmul.f32 %v1660, 0.5
  %v1693 = vmul.f32 %v1661, 0.5
  %v1694 = vmul.f32 %v1662, 0.5
  %v1695 = vmul.f32 %v1663, 0.5
  %v1696 = vmul.f32 %v1664, 0.5
  %v1697 = vmul.f32 %v1665, 0.5
  %v1698 = vmul.f32 %v1666, 0.5
  %v1699 = vmul.f32 %v1667, 0.5
  %v1700 = vmul.f32 %v1668, 0.5
  %v1701 = vmul.f32 %v1669, 0.5
  %v1702 = vmul.f32 %v1670, 0.5
  %v1703 = vmul.f32 %v1671, 0.5
  %v1704 = vmul.f32 %v1672, 0.5
  %v1705 = vmul.f32 %v1673, 0.5
  %v1706 = vmul.f32 %v1674, 0.5
  %v1707 = vmul.f32 %v1675, 0.5
  %v1708 = vmul.f32 %v1676, 0.5
  %v1709 = vmul.f32 %v1677, 0.5
  %v1710 = vmul.f32 %v1678, 0.5
  %1743 = vrot.lane.b32.xlu0 %v555, 24
  %v1744 = vpop.permute.xlu0 %1743
  %1745 = vrot.lane.b32.xlu0 %v558, 24
  %v1746 = vpop.permute.xlu0 %1745
  %1747 = vrot.lane.b32.xlu0 %v563, 24
  %v1748 = vpop.permute.xlu0 %1747
  %1749 = vrot.lane.b32.xlu0 %v566, 24
  %v1750 = vpop.permute.xlu0 %1749
  %1751 = vrot.lane.b32.xlu0 %v571, 24
  %v1752 = vpop.permute.xlu0 %1751
  %1753 = vrot.lane.b32.xlu0 %v574, 24
  %v1754 = vpop.permute.xlu0 %1753
  %1755 = vrot.lane.b32.xlu0 %v579, 24
  %v1756 = vpop.permute.xlu0 %1755
  %1757 = vrot.lane.b32.xlu0 %v582, 24
  %v1758 = vpop.permute.xlu0 %1757
  %1759 = vrot.lane.b32.xlu0 %v587, 24
  %v1760 = vpop.permute.xlu0 %1759
  %1761 = vrot.lane.b32.xlu0 %v590, 24
  %v1762 = vpop.permute.xlu0 %1761
  %1763 = vrot.lane.b32.xlu0 %v595, 24
  %v1764 = vpop.permute.xlu0 %1763
  %1765 = vrot.lane.b32.xlu0 %v598, 24
  %v1766 = vpop.permute.xlu0 %1765
  %1767 = vrot.lane.b32.xlu0 %v603, 24
  %v1768 = vpop.permute.xlu0 %1767
  %1769 = vrot.lane.b32.xlu0 %v606, 24
  %v1770 = vpop.permute.xlu0 %1769
  %1771 = vrot.lane.b32.xlu0 %v611, 24
  %v1772 = vpop.permute.xlu0 %1771
  %1773 = vrot.lane.b32.xlu0 %v614, 24
  %v1774 = vpop.permute.xlu0 %1773
  %1775 = vrot.lane.b32.xlu0 %v619, 24
  %v1776 = vpop.permute.xlu0 %1775
  %1777 = vrot.lane.b32.xlu0 %v622, 24
  %v1778 = vpop.permute.xlu0 %1777
  %1779 = vrot.lane.b32.xlu0 %v627, 24
  %v1780 = vpop.permute.xlu0 %1779
  %1781 = vrot.lane.b32.xlu0 %v630, 24
  %v1782 = vpop.permute.xlu0 %1781
  %1783 = vrot.lane.b32.xlu0 %v635, 24
  %v1784 = vpop.permute.xlu0 %1783
  %1785 = vrot.lane.b32.xlu0 %v638, 24
  %v1786 = vpop.permute.xlu0 %1785
  %1787 = vrot.lane.b32.xlu0 %v643, 24
  %v1788 = vpop.permute.xlu0 %1787
  %1789 = vrot.lane.b32.xlu0 %v646, 24
  %v1790 = vpop.permute.xlu0 %1789
  %1791 = vrot.lane.b32.xlu0 %v651, 24
  %v1792 = vpop.permute.xlu0 %1791
  %1793 = vrot.lane.b32.xlu0 %v654, 24
  %v1794 = vpop.permute.xlu0 %1793
  %1795 = vrot.lane.b32.xlu0 %v659, 24
  %v1796 = vpop.permute.xlu0 %1795
  %1797 = vrot.lane.b32.xlu0 %v662, 24
  %v1798 = vpop.permute.xlu0 %1797
  %1799 = vrot.lane.b32.xlu0 %v667, 24
  %v1800 = vpop.permute.xlu0 %1799
  %1801 = vrot.lane.b32.xlu0 %v670, 24
  %v1802 = vpop.permute.xlu0 %1801
  %1803 = vrot.lane.b32.xlu0 %v675, 24
  %v1804 = vpop.permute.xlu0 %1803
  %1805 = vrot.lane.b32.xlu0 %v678, 24
  %v1806 = vpop.permute.xlu0 %1805
  %v1839 = vsel %vm167, %v1679, %v1744
  %v1840 = vsel %vm167, %v1680, %v1746
  %v1841 = vsel %vm167, %v1681, %v1748
  %v1842 = vsel %vm167, %v1682, %v1750
  %v1843 = vsel %vm167, %v1683, %v1752
  %v1844 = vsel %vm167, %v1684, %v1754
  %v1845 = vsel %vm167, %v1685, %v1756
  %v1846 = vsel %vm167, %v1686, %v1758
  %v1847 = vsel %vm167, %v1687, %v1760
  %v1848 = vsel %vm167, %v1688, %v1762
  %v1849 = vsel %vm167, %v1689, %v1764
  %v1850 = vsel %vm167, %v1690, %v1766
  %v1851 = vsel %vm167, %v1691, %v1768
  %v1852 = vsel %vm167, %v1692, %v1770
  %v1853 = vsel %vm167, %v1693, %v1772
  %v1854 = vsel %vm167, %v1694, %v1774
  %v1855 = vsel %vm167, %v1695, %v1776
  %v1856 = vsel %vm167, %v1696, %v1778
  %v1857 = vsel %vm167, %v1697, %v1780
  %v1858 = vsel %vm167, %v1698, %v1782
  %v1859 = vsel %vm167, %v1699, %v1784
  %v1860 = vsel %vm167, %v1700, %v1786
  %v1861 = vsel %vm167, %v1701, %v1788
  %v1862 = vsel %vm167, %v1702, %v1790
  %v1863 = vsel %vm167, %v1703, %v1792
  %v1864 = vsel %vm167, %v1704, %v1794
  %v1865 = vsel %vm167, %v1705, %v1796
  %v1866 = vsel %vm167, %v1706, %v1798
  %v1867 = vsel %vm167, %v1707, %v1800
  %v1868 = vsel %vm167, %v1708, %v1802
  %v1869 = vsel %vm167, %v1709, %v1804
  %v1870 = vsel %vm167, %v1710, %v1806
  %vm1871 = vcmask 687104
  %v1872 = vsel %vm1871, %v1839, 0.0
  %v1873 = vsel %vm1871, %v1840, 0.0
  %v1874 = vsel %vm1871, %v1841, 0.0
  %v1875 = vsel %vm1871, %v1842, 0.0
  %v1876 = vsel %vm1871, %v1843, 0.0
  %v1877 = vsel %vm1871, %v1844, 0.0
  %v1878 = vsel %vm1871, %v1845, 0.0
  %v1879 = vsel %vm1871, %v1846, 0.0
  %v1880 = vsel %vm1871, %v1847, 0.0
  %v1881 = vsel %vm1871, %v1848, 0.0
  %v1882 = vsel %vm1871, %v1849, 0.0
  %v1883 = vsel %vm1871, %v1850, 0.0
  %v1884 = vsel %vm1871, %v1851, 0.0
  %v1885 = vsel %vm1871, %v1852, 0.0
  %v1886 = vsel %vm1871, %v1853, 0.0
  %v1887 = vsel %vm1871, %v1854, 0.0
  %v1888 = vsel %vm1871, %v1855, 0.0
  %v1889 = vsel %vm1871, %v1856, 0.0
  %v1890 = vsel %vm1871, %v1857, 0.0
  %v1891 = vsel %vm1871, %v1858, 0.0
  %v1892 = vsel %vm1871, %v1859, 0.0
  %v1893 = vsel %vm1871, %v1860, 0.0
  %v1894 = vsel %vm1871, %v1861, 0.0
  %v1895 = vsel %vm1871, %v1862, 0.0
  %v1896 = vsel %vm1871, %v1863, 0.0
  %v1897 = vsel %vm1871, %v1864, 0.0
  %v1898 = vsel %vm1871, %v1865, 0.0
  %v1899 = vsel %vm1871, %v1866, 0.0
  %v1900 = vsel %vm1871, %v1867, 0.0
  %v1901 = vsel %vm1871, %v1868, 0.0
  %v1902 = vsel %vm1871, %v1869, 0.0
  %v1903 = vsel %vm1871, %v1870, 0.0
  %v1904 = vpack.c.bf16 %v1873, %v1872
  %v1905 = vpack.c.bf16 %v1875, %v1874
  %v1906 = vpack.c.bf16 %v1877, %v1876
  %v1907 = vpack.c.bf16 %v1879, %v1878
  %v1908 = vpack.c.bf16 %v1881, %v1880
  %v1909 = vpack.c.bf16 %v1883, %v1882
  %v1910 = vpack.c.bf16 %v1885, %v1884
  %v1911 = vpack.c.bf16 %v1887, %v1886
  %v1912 = vpack.c.bf16 %v1889, %v1888
  %v1913 = vpack.c.bf16 %v1891, %v1890
  %v1914 = vpack.c.bf16 %v1893, %v1892
  %v1915 = vpack.c.bf16 %v1895, %v1894
  %v1916 = vpack.c.bf16 %v1897, %v1896
  %v1917 = vpack.c.bf16 %v1899, %v1898
  %v1918 = vpack.c.bf16 %v1901, %v1900
  %v1919 = vpack.c.bf16 %v1903, %v1902
  %v1936 = vunpack.c.l.b16 %v1904
  %v1937 = vunpack.c.h.b16 %v1904
  %v1938 = vunpack.c.l.b16 %v1905
  %v1939 = vunpack.c.h.b16 %v1905
  %v1940 = vunpack.c.l.b16 %v1906
  %v1941 = vunpack.c.h.b16 %v1906
  %v1942 = vunpack.c.l.b16 %v1907
  %v1943 = vunpack.c.h.b16 %v1907
  %v1944 = vunpack.c.l.b16 %v1908
  %v1945 = vunpack.c.h.b16 %v1908
  %v1946 = vunpack.c.l.b16 %v1909
  %v1947 = vunpack.c.h.b16 %v1909
  %v1948 = vunpack.c.l.b16 %v1910
  %v1949 = vunpack.c.h.b16 %v1910
  %v1950 = vunpack.c.l.b16 %v1911
  %v1951 = vunpack.c.h.b16 %v1911
  %v1952 = vunpack.c.l.b16 %v1912
  %v1953 = vunpack.c.h.b16 %v1912
  %v1954 = vunpack.c.l.b16 %v1913
  %v1955 = vunpack.c.h.b16 %v1913
  %v1956 = vunpack.c.l.b16 %v1914
  %v1957 = vunpack.c.h.b16 %v1914
  %v1958 = vunpack.c.l.b16 %v1915
  %v1959 = vunpack.c.h.b16 %v1915
  %v1960 = vunpack.c.l.b16 %v1916
  %v1961 = vunpack.c.h.b16 %v1916
  %v1962 = vunpack.c.l.b16 %v1917
  %v1963 = vunpack.c.h.b16 %v1917
  %v1964 = vunpack.c.l.b16 %v1918
  %v1965 = vunpack.c.h.b16 %v1918
  %v1966 = vunpack.c.l.b16 %v1919
  %v1967 = vunpack.c.h.b16 %v1919
  %v1968 = vpack.c.b16 %v1936, %v1936
  %v1969 = vpack.c.b16 %v1937, %v1937
  %v1970 = vpack.c.b16 %v1938, %v1938
  %v1971 = vpack.c.b16 %v1939, %v1939
  %v1972 = vpack.c.b16 %v1940, %v1940
  %v1973 = vpack.c.b16 %v1941, %v1941
  %v1974 = vpack.c.b16 %v1942, %v1942
  %v1975 = vpack.c.b16 %v1943, %v1943
  %v1976 = vpack.c.b16 %v1944, %v1944
  %v1977 = vpack.c.b16 %v1945, %v1945
  %v1978 = vpack.c.b16 %v1946, %v1946
  %v1979 = vpack.c.b16 %v1947, %v1947
  %v1980 = vpack.c.b16 %v1948, %v1948
  %v1981 = vpack.c.b16 %v1949, %v1949
  %v1982 = vpack.c.b16 %v1950, %v1950
  %v1983 = vpack.c.b16 %v1951, %v1951
  %v1984 = vpack.c.b16 %v1952, %v1952
  %v1985 = vpack.c.b16 %v1953, %v1953
  %v1986 = vpack.c.b16 %v1954, %v1954
  %v1987 = vpack.c.b16 %v1955, %v1955
  %v1988 = vpack.c.b16 %v1956, %v1956
  %v1989 = vpack.c.b16 %v1957, %v1957
  %v1990 = vpack.c.b16 %v1958, %v1958
  %v1991 = vpack.c.b16 %v1959, %v1959
  %v1992 = vpack.c.b16 %v1960, %v1960
  %v1993 = vpack.c.b16 %v1961, %v1961
  %v1994 = vpack.c.b16 %v1962, %v1962
  %v1995 = vpack.c.b16 %v1963, %v1963
  %v1996 = vpack.c.b16 %v1964, %v1964
  %v1997 = vpack.c.b16 %v1965, %v1965
  %v1998 = vpack.c.b16 %v1966, %v1966
  %v1999 = vpack.c.b16 %v1967, %v1967
  %2032 = vst [vmem:[%s10] sm:$0xf] %v1968
  %2033 = vst [vmem:[%s10 + $0x4] sm:$0xf] %v1969
  %2034 = vst [vmem:[%s10 + $0x8] sm:$0xf] %v1970
  %2035 = vst [vmem:[%s10 + $0xc] sm:$0xf] %v1971
  %2036 = vst [vmem:[%s10 + $0x10] sm:$0xf] %v1972
  %2037 = vst [vmem:[%s10 + $0x14] sm:$0xf] %v1973
  %2038 = vst [vmem:[%s10 + $0x18] sm:$0xf] %v1974
  %2039 = vst [vmem:[%s10 + $0x1c] sm:$0xf] %v1975
  %2040 = vst [vmem:[%s10 + $0x20] sm:$0xf] %v1976
  %2041 = vst [vmem:[%s10 + $0x24] sm:$0xf] %v1977
  %2042 = vst [vmem:[%s10 + $0x28] sm:$0xf] %v1978
  %2043 = vst [vmem:[%s10 + $0x2c] sm:$0xf] %v1979
  %2044 = vst [vmem:[%s10 + $0x30] sm:$0xf] %v1980
  %2045 = vst [vmem:[%s10 + $0x34] sm:$0xf] %v1981
  %2046 = vst [vmem:[%s10 + $0x38] sm:$0xf] %v1982
  %2047 = vst [vmem:[%s10 + $0x3c] sm:$0xf] %v1983
  %2048 = vst [vmem:[%s10 + $0x40] sm:$0xf] %v1984
  %2049 = vst [vmem:[%s10 + $0x44] sm:$0xf] %v1985
  %2050 = vst [vmem:[%s10 + $0x48] sm:$0xf] %v1986
  %2051 = vst [vmem:[%s10 + $0x4c] sm:$0xf] %v1987
  %2052 = vst [vmem:[%s10 + $0x50] sm:$0xf] %v1988
  %2053 = vst [vmem:[%s10 + $0x54] sm:$0xf] %v1989
  %2054 = vst [vmem:[%s10 + $0x58] sm:$0xf] %v1990
  %2055 = vst [vmem:[%s10 + $0x5c] sm:$0xf] %v1991
  %2056 = vst [vmem:[%s10 + $0x60] sm:$0xf] %v1992
  %2057 = vst [vmem:[%s10 + $0x64] sm:$0xf] %v1993
  %2058 = vst [vmem:[%s10 + $0x68] sm:$0xf] %v1994
  %2059 = vst [vmem:[%s10 + $0x6c] sm:$0xf] %v1995
  %2060 = vst [vmem:[%s10 + $0x70] sm:$0xf] %v1996
  %2061 = vst [vmem:[%s10 + $0x74] sm:$0xf] %v1997
  %2062 = vst [vmem:[%s10 + $0x78] sm:$0xf] %v1998
  %2063 = vst [vmem:[%s10 + $0x7c] sm:$0xf] %v1999
  // Predicated region
  $region42: #{vae_forward.1} parent=0 // pred_check
    _
  $region43: #{vae_forward.1} parent=0 // pred_check_branch
    %2065 = sbr.rel (0) target = $region45
  $region44: #{vae_forward.1} parent=0 // pred_region
    _
  $region45: #{vae_forward.1} parent=0 // pred_fallthru
    _
  // Predicated region
  $region46: #{vae_forward.1} parent=0 // pred_check
    _
  $region47: #{vae_forward.1} parent=0 // pred_check_branch
    %2067 = sbr.rel (0) target = $region49
  $region48: #{vae_forward.1} parent=0 // pred_region
    _
  $region49: #{vae_forward.1} parent=0 // pred_fallthru
    _

</llo_original>
